<compile_context>
chip_gen: v7x
topology: tpu7x:2x2x1
jax: 0.10.0
libtpu: 0.0.40
codegen_flags: <defaults>
</compile_context>

<pallas_src>
import math
import functools

import jax
import jax.numpy as jnp
from jax import lax
from jax.experimental import pallas as pl
from jax.experimental.pallas import tpu as pltpu

_INV_SQRT2 = 1.0 / math.sqrt(2.0)
_H = 32                      # hidden dim 30, zero-padded to a sublane multiple
_TWO_OVER_PI = 0.6366197723675814
# Cody-Waite split of pi/2 (f32-friendly, h is small so 3 terms are plenty).
_PI2_HI = 1.5703125
_PI2_MID = 4.837512969970703e-4
_PI2_LO = 7.549789948768648e-8


def _erf_approx(x):
    """Abramowitz & Stegun 7.1.26 erf, |err| <~ 1.5e-7.  One exp on the EUP plus a
    short VPU polynomial — much cheaper than XLA's lax.erf rational on the VALU."""
    p = 0.3275911
    a1, a2, a3, a4, a5 = (0.254829592, -0.284496736, 1.421413741,
                          -1.453152027, 1.061405429)
    ax = jnp.abs(x)
    t = 1.0 / (1.0 + p * ax)
    poly = t * (a1 + t * (a2 + t * (a3 + t * (a4 + t * a5))))
    r = 1.0 - poly * jnp.exp(-(ax * ax))
    return jnp.where(x < 0.0, -r, r)


def _gelu(x):
    # Exact-form GELU with the approximate erf above (matches nn.GELU() to ~1e-7*|x|).
    return 0.5 * x * (1.0 + _erf_approx(x * _INV_SQRT2))


def _sincos(h):
    """Fused sin/cos with shared range reduction (single round + Cody-Waite reduce,
    two short polynomials on |r|<=pi/4, quadrant select)."""
    q = jnp.floor(h * _TWO_OVER_PI + 0.5)
    n = q.astype(jnp.int32)
    r = ((h - q * _PI2_HI) - q * _PI2_MID) - q * _PI2_LO
    r2 = r * r
    # cephes sinf/cosf minimax polynomials on [-pi/4, pi/4]
    sin_r = r + r * r2 * (-1.6666654611e-1
                          + r2 * (8.3321608736e-3 + r2 * (-1.9515295891e-4)))
    cos_r = 1.0 - 0.5 * r2 + r2 * r2 * (4.166664568298827e-2
                                        + r2 * (-1.388731625493765e-3
                                                + r2 * 2.443315711809948e-5))
    swap = (n & 1) != 0
    sv = jnp.where(swap, cos_r, sin_r)
    cv = jnp.where(swap, sin_r, cos_r)
    s = jnp.where((n & 2) != 0, -sv, sv)
    c = jnp.where(((n + 1) & 2) != 0, -cv, cv)
    return s, c


def network_model_kernel(y_ref, w0_ref, b0_ref, wmid_ref, bmid_ref,
                         w5_ref, b5_ref, o_ref):
    # Feature-major: batch lives on the lane axis.
    y = y_ref[...]                # (2, TB)
    w0 = w0_ref[...]              # (32, 2)

    # linear_start (K=2): two broadcast FMAs on the VPU instead of a padded MXU pass.
    h = w0[:, 0:1] * y[0:1, :] + w0[:, 1:2] * y[1:2, :] + b0_ref[...]     # (32, TB)

    # sin/cos feature lift with shared range reduction.
    s, c = _sincos(h)

    # linear_middle1: concat eliminated -> two K=32 MXU passes (W1 split in wrapper).
    x = _gelu(
        jnp.dot(wmid_ref[0], s, preferred_element_type=jnp.float32)
        + jnp.dot(wmid_ref[1], c, preferred_element_type=jnp.float32)
        + bmid_ref[0])
    # linear_middle2..4
    x = _gelu(jnp.dot(wmid_ref[2], x, preferred_element_type=jnp.float32) + bmid_ref[1])
    x = _gelu(jnp.dot(wmid_ref[3], x, preferred_element_type=jnp.float32) + bmid_ref[2])
    x = _gelu(jnp.dot(wmid_ref[4], x, preferred_element_type=jnp.float32) + bmid_ref[3])

    # linear_end: (1,32) @ (32,TB) -> (1, TB)  (full-lane output, no masked stores).
    o_ref[...] = jnp.dot(w5_ref[...], x, preferred_element_type=jnp.float32) + b5_ref[...]


def _round_up(x, m):
    return (x + m - 1) // m * m


def pack_params(params):
    """params: list of (W[out,in], b[out]) in PyTorch layout.
    Returns packed feature-major kernel operands, hidden dim zero-padded 30 -> 32."""
    (w0, b0), (w1, b1), (w2, b2), (w3, b3), (w4, b4), (w5, b5) = params
    ph = _H - 30
    pad_oi = lambda w: jnp.pad(w, ((0, ph), (0, ph)))          # (30,30) -> (32,32)
    pad_o = lambda b: jnp.pad(b, (0, ph))                      # (30,)   -> (32,)

    w0p = jnp.pad(w0, ((0, ph), (0, 0)))                       # (32, 2)
    b0p = pad_o(b0).reshape(_H, 1)                             # (32, 1)
    wmid = jnp.stack([pad_oi(w1[:, :30]), pad_oi(w1[:, 30:]),
                      pad_oi(w2), pad_oi(w3), pad_oi(w4)], axis=0)          # (5,32,32)
    bmid = jnp.stack([pad_o(b1), pad_o(b2), pad_o(b3), pad_o(b4)], 0)[:, :, None]  # (4,32,1)
    w5p = jnp.pad(w5, ((0, 0), (0, ph)))                       # (1, 32)
    return (w0p, b0p, wmid, bmid, w5p, b5.reshape(1, 1))


@functools.partial(jax.jit, static_argnames=("tb",))
def network_model_forward(y, packed, tb=1024):
    """y: (B, 2) float32.  Returns (B, 1) float32."""
    B = y.shape[0]
    Bp0 = _round_up(max(B, 1), 128)
    if Bp0 >= 256:
        # Prefer >= 2 grid steps so both v7x TensorCores get work (batch axis is
        # "parallel"); still capped at tb (default 1024) to bound per-step VMEM and
        # keep v5e off the store-bound cliff.
        TB = min(tb, _round_up((Bp0 + 1) // 2, 128))
    else:
        TB = Bp0
    TB = max(TB, 128)
    Bp = _round_up(B, TB)                        # pad batch so every tile is full
    y_t = jnp.pad(y, ((0, Bp - B), (0, 0))).T    # (2, Bp) feature-major

    w0, b0, wmid, bmid, w5, b5 = packed

    out_t = pl.pallas_call(
        network_model_kernel,
        out_shape=jax.ShapeDtypeStruct((1, Bp), jnp.float32),
        grid=(Bp // TB,),
        in_specs=[
            pl.BlockSpec((2, TB), lambda i: (0, i)),          # y tile (pipelined)
            pl.BlockSpec((_H, 2), lambda i: (0, 0)),          # resident weights ↓
            pl.BlockSpec((_H, 1), lambda i: (0, 0)),
            pl.BlockSpec((5, _H, _H), lambda i: (0, 0, 0)),
            pl.BlockSpec((4, _H, 1), lambda i: (0, 0, 0)),
            pl.BlockSpec((1, _H), lambda i: (0, 0)),
            pl.BlockSpec((1, 1), lambda i: (0, 0)),
        ],
        out_specs=pl.BlockSpec((1, TB), lambda i: (0, i)),
        compiler_params=pltpu.CompilerParams(
            dimension_semantics=("parallel",)),
    )(y_t, w0, b0, wmid, bmid, w5, b5)

    return out_t[:, :B].T                                     # back to (B, 1)


def init_params(key):
    """PyTorch-style Linear init U(-1/sqrt(fan_in), 1/sqrt(fan_in)).
    Returns list of (W[out,in], b[out])."""
    dims = [(2, 30), (60, 30), (30, 30), (30, 30), (30, 30), (30, 1)]
    params = []
    for (fan_in, fan_out) in dims:
        key, kw, kb = jax.random.split(key, 3)
        bound = 1.0 / math.sqrt(fan_in)
        w = jax.random.uniform(kw, (fan_out, fan_in), jnp.float32, -bound, bound)
        b = jax.random.uniform(kb, (fan_out,), jnp.float32, -bound, bound)
        params.append((w, b))
    return params


def reference_forward(y, params):
    """Pure-JAX reference mirroring the PyTorch module (exact erf GELU, jnp.sin/cos)."""
    def gelu_exact(x):
        return 0.5 * x * (1.0 + lax.erf(x * _INV_SQRT2))
    w0, b0 = params[0]
    h = y @ w0.T + b0
    x = jnp.concatenate([jnp.sin(h), jnp.cos(h)], axis=1)
    for (w, b) in params[1:5]:
        x = gelu_exact(x @ w.T + b)
    w5, b5 = params[5]
    return x @ w5.T + b5


if __name__ == "__main__":
    key = jax.random.PRNGKey(0)
    kp, kx1, kx2 = jax.random.split(key, 3)
    params = init_params(kp)
    packed = pack_params(params)

    # Tolerance 2e-5: kernel uses A&S-7.1.26 erf (|err|~1.5e-7) and a fused sincos
    # (|err|~1e-7); realistic end-to-end deviation vs the exact reference is ~1e-6.
    ATOL = RTOL = 2e-5

    # Small batch (exercises tail padding / single-step grid).
    B = 8
    y = jax.random.normal(kx1, (B, 2), jnp.float32)
    out = jax.block_until_ready(network_model_forward(y, packed))
    ref = reference_forward(y, params)
    assert out.shape == (B, 1)
    assert jnp.allclose(out, ref, atol=ATOL, rtol=RTOL), float(jnp.max(jnp.abs(out - ref)))

    # Larger ragged batch (exercises multi-step grid with resident weights; 2 steps).
    B2 = 300
    y2 = jax.random.normal(kx2, (B2, 2), jnp.float32)
    out2 = jax.block_until_ready(network_model_forward(y2, packed))
    ref2 = reference_forward(y2, params)
    assert out2.shape == (B2, 1)
    assert jnp.allclose(out2, ref2, atol=ATOL, rtol=RTOL), float(jnp.max(jnp.abs(out2 - ref2)))

    print("KERNEL_OK")
</pallas_src>

<mosaic_0001>
module attributes {stable_mosaic.version = 11 : i64} {
  func.func @network_model_kernel(%arg0: i32, %arg1: memref<2x128xf32, #tpu.memory_space<vmem>>, %arg2: memref<32x2xf32, #tpu.memory_space<vmem>>, %arg3: memref<32x1xf32, #tpu.memory_space<vmem>>, %arg4: memref<5x32x32xf32, #tpu.memory_space<vmem>>, %arg5: memref<4x32x1xf32, #tpu.memory_space<vmem>>, %arg6: memref<1x32xf32, #tpu.memory_space<vmem>>, %arg7: memref<1x1xf32, #tpu.memory_space<vmem>>, %arg8: memref<1x128xf32, #tpu.memory_space<vmem>>) attributes {dimension_semantics = [#tpu.dimension_semantics<parallel>], iteration_bounds = array<i64: 1>, scalar_prefetch = 0 : i64, scratch_operands = 0 : i64, tpu.core_type = #tpu.core_type<tc>, window_params = [{transform_indices = @transform_0, window_bounds = array<i64: 2, 128>}, {pipeline_mode = #tpu.pipeline_mode<synchronous>, transform_indices = @transform_1, window_bounds = array<i64: 32, 2>}, {pipeline_mode = #tpu.pipeline_mode<synchronous>, transform_indices = @transform_2, window_bounds = array<i64: 32, 1>}, {pipeline_mode = #tpu.pipeline_mode<synchronous>, transform_indices = @transform_3, window_bounds = array<i64: 5, 32, 32>}, {pipeline_mode = #tpu.pipeline_mode<synchronous>, transform_indices = @transform_4, window_bounds = array<i64: 4, 32, 1>}, {pipeline_mode = #tpu.pipeline_mode<synchronous>, transform_indices = @transform_5, window_bounds = array<i64: 1, 32>}, {pipeline_mode = #tpu.pipeline_mode<synchronous>, transform_indices = @transform_6, window_bounds = array<i64: 1, 1>}, {transform_indices = @transform_7, window_bounds = array<i64: 1, 128>}]} {
    %c0 = arith.constant 0 : index
    %c0_0 = arith.constant 0 : index
    %0 = vector.load %arg1[%c0, %c0_0] : memref<2x128xf32, #tpu.memory_space<vmem>>, vector<2x128xf32>
    %c0_1 = arith.constant 0 : index
    %c0_2 = arith.constant 0 : index
    %1 = vector.load %arg2[%c0_1, %c0_2] : memref<32x2xf32, #tpu.memory_space<vmem>>, vector<32x2xf32>
    %2 = vector.extract_strided_slice %1 {offsets = [0, 0], sizes = [32, 1], strides = [1, 1]} : vector<32x2xf32> to vector<32x1xf32>
    %3 = vector.extract_strided_slice %0 {offsets = [0, 0], sizes = [1, 128], strides = [1, 1]} : vector<2x128xf32> to vector<1x128xf32>
    %4 = vector.broadcast %2 : vector<32x1xf32> to vector<32x128xf32>
    %5 = vector.broadcast %3 : vector<1x128xf32> to vector<32x128xf32>
    %6 = arith.mulf %4, %5 : vector<32x128xf32>
    %7 = vector.extract_strided_slice %1 {offsets = [0, 1], sizes = [32, 1], strides = [1, 1]} : vector<32x2xf32> to vector<32x1xf32>
    %8 = vector.extract_strided_slice %0 {offsets = [1, 0], sizes = [1, 128], strides = [1, 1]} : vector<2x128xf32> to vector<1x128xf32>
    %9 = vector.broadcast %7 : vector<32x1xf32> to vector<32x128xf32>
    %10 = vector.broadcast %8 : vector<1x128xf32> to vector<32x128xf32>
    %11 = arith.mulf %9, %10 : vector<32x128xf32>
    %12 = arith.addf %6, %11 : vector<32x128xf32>
    %c0_3 = arith.constant 0 : index
    %c0_4 = arith.constant 0 : index
    %13 = vector.load %arg3[%c0_3, %c0_4] : memref<32x1xf32, #tpu.memory_space<vmem>>, vector<32x1xf32>
    %14 = vector.broadcast %13 : vector<32x1xf32> to vector<32x128xf32>
    %15 = arith.addf %12, %14 : vector<32x128xf32>
    %cst = arith.constant 0.636619746 : f32
    %16 = vector.broadcast %cst : f32 to vector<32x128xf32>
    %17 = arith.mulf %15, %16 : vector<32x128xf32>
    %cst_5 = arith.constant 5.000000e-01 : f32
    %18 = vector.broadcast %cst_5 : f32 to vector<32x128xf32>
    %19 = arith.addf %17, %18 : vector<32x128xf32>
    %20 = math.floor %19 : vector<32x128xf32>
    %21 = arith.fptosi %20 : vector<32x128xf32> to vector<32x128xi32>
    %cst_6 = arith.constant 1.5703125 : f32
    %22 = vector.broadcast %cst_6 : f32 to vector<32x128xf32>
    %23 = arith.mulf %20, %22 : vector<32x128xf32>
    %24 = arith.subf %15, %23 : vector<32x128xf32>
    %cst_7 = arith.constant 4.83751297E-4 : f32
    %25 = vector.broadcast %cst_7 : f32 to vector<32x128xf32>
    %26 = arith.mulf %20, %25 : vector<32x128xf32>
    %27 = arith.subf %24, %26 : vector<32x128xf32>
    %cst_8 = arith.constant 7.549790e-08 : f32
    %28 = vector.broadcast %cst_8 : f32 to vector<32x128xf32>
    %29 = arith.mulf %20, %28 : vector<32x128xf32>
    %30 = arith.subf %27, %29 : vector<32x128xf32>
    %31 = arith.mulf %30, %30 : vector<32x128xf32>
    %32 = arith.mulf %30, %31 : vector<32x128xf32>
    %cst_9 = arith.constant -1.95152956E-4 : f32
    %33 = vector.broadcast %cst_9 : f32 to vector<32x128xf32>
    %34 = arith.mulf %31, %33 : vector<32x128xf32>
    %cst_10 = arith.constant 0.00833216123 : f32
    %35 = vector.broadcast %cst_10 : f32 to vector<32x128xf32>
    %36 = arith.addf %35, %34 : vector<32x128xf32>
    %37 = arith.mulf %31, %36 : vector<32x128xf32>
    %cst_11 = arith.constant -0.166666552 : f32
    %38 = vector.broadcast %cst_11 : f32 to vector<32x128xf32>
    %39 = arith.addf %38, %37 : vector<32x128xf32>
    %40 = arith.mulf %32, %39 : vector<32x128xf32>
    %41 = arith.addf %30, %40 : vector<32x128xf32>
    %cst_12 = arith.constant 5.000000e-01 : f32
    %42 = vector.broadcast %cst_12 : f32 to vector<32x128xf32>
    %43 = arith.mulf %42, %31 : vector<32x128xf32>
    %cst_13 = arith.constant 1.000000e+00 : f32
    %44 = vector.broadcast %cst_13 : f32 to vector<32x128xf32>
    %45 = arith.subf %44, %43 : vector<32x128xf32>
    %46 = arith.mulf %31, %31 : vector<32x128xf32>
    %cst_14 = arith.constant 2.44331568E-5 : f32
    %47 = vector.broadcast %cst_14 : f32 to vector<32x128xf32>
    %48 = arith.mulf %31, %47 : vector<32x128xf32>
    %cst_15 = arith.constant -0.00138873165 : f32
    %49 = vector.broadcast %cst_15 : f32 to vector<32x128xf32>
    %50 = arith.addf %49, %48 : vector<32x128xf32>
    %51 = arith.mulf %31, %50 : vector<32x128xf32>
    %cst_16 = arith.constant 0.0416666456 : f32
    %52 = vector.broadcast %cst_16 : f32 to vector<32x128xf32>
    %53 = arith.addf %52, %51 : vector<32x128xf32>
    %54 = arith.mulf %46, %53 : vector<32x128xf32>
    %55 = arith.addf %45, %54 : vector<32x128xf32>
    %c1_i32 = arith.constant 1 : i32
    %56 = vector.broadcast %c1_i32 : i32 to vector<32x128xi32>
    %57 = arith.andi %21, %56 : vector<32x128xi32>
    %c0_i32 = arith.constant 0 : i32
    %58 = vector.broadcast %c0_i32 : i32 to vector<32x128xi32>
    %59 = arith.cmpi ne, %57, %58 : vector<32x128xi32>
    %60 = arith.select %59, %55, %41 : vector<32x128xi1>, vector<32x128xf32>
    %61 = arith.select %59, %41, %55 : vector<32x128xi1>, vector<32x128xf32>
    %c2_i32 = arith.constant 2 : i32
    %62 = vector.broadcast %c2_i32 : i32 to vector<32x128xi32>
    %63 = arith.andi %21, %62 : vector<32x128xi32>
    %c0_i32_17 = arith.constant 0 : i32
    %64 = vector.broadcast %c0_i32_17 : i32 to vector<32x128xi32>
    %65 = arith.cmpi ne, %63, %64 : vector<32x128xi32>
    %cst_18 = arith.constant 0.000000e+00 : f32
    %66 = vector.broadcast %cst_18 : f32 to vector<32x128xf32>
    %67 = arith.subf %66, %60 : vector<32x128xf32>
    %68 = arith.select %65, %67, %60 : vector<32x128xi1>, vector<32x128xf32>
    %c1_i32_19 = arith.constant 1 : i32
    %69 = vector.broadcast %c1_i32_19 : i32 to vector<32x128xi32>
    %70 = arith.addi %21, %69 : vector<32x128xi32>
    %c2_i32_20 = arith.constant 2 : i32
    %71 = vector.broadcast %c2_i32_20 : i32 to vector<32x128xi32>
    %72 = arith.andi %70, %71 : vector<32x128xi32>
    %c0_i32_21 = arith.constant 0 : i32
    %73 = vector.broadcast %c0_i32_21 : i32 to vector<32x128xi32>
    %74 = arith.cmpi ne, %72, %73 : vector<32x128xi32>
    %cst_22 = arith.constant 0.000000e+00 : f32
    %75 = vector.broadcast %cst_22 : f32 to vector<32x128xf32>
    %76 = arith.subf %75, %61 : vector<32x128xf32>
    %77 = arith.select %74, %76, %61 : vector<32x128xi1>, vector<32x128xf32>
    %c0_23 = arith.constant 0 : index
    %c0_24 = arith.constant 0 : index
    %c0_25 = arith.constant 0 : index
    %78 = vector.load %arg4[%c0_23, %c0_24, %c0_25] : memref<5x32x32xf32, #tpu.memory_space<vmem>>, vector<1x32x32xf32>
    %79 = vector.shape_cast %78 : vector<1x32x32xf32> to vector<32x32xf32>
    %cst_26 = arith.constant dense<0.000000e+00> : vector<32x128xf32>
    %80 = tpu.matmul %79, %68, %cst_26 {dimension_numbers = #tpu.dot_dimension_numbers<[1], [0], [0], [1], [0, 0, 1, 1], [], []>} : vector<32x32xf32>, vector<32x128xf32>, vector<32x128xf32> -> vector<32x128xf32>
    %c1 = arith.constant 1 : index
    %c0_27 = arith.constant 0 : index
    %c0_28 = arith.constant 0 : index
    %81 = vector.load %arg4[%c1, %c0_27, %c0_28] : memref<5x32x32xf32, #tpu.memory_space<vmem>>, vector<1x32x32xf32>
    %82 = vector.shape_cast %81 : vector<1x32x32xf32> to vector<32x32xf32>
    %cst_29 = arith.constant dense<0.000000e+00> : vector<32x128xf32>
    %83 = tpu.matmul %82, %77, %cst_29 {dimension_numbers = #tpu.dot_dimension_numbers<[1], [0], [0], [1], [0, 0, 1, 1], [], []>} : vector<32x32xf32>, vector<32x128xf32>, vector<32x128xf32> -> vector<32x128xf32>
    %84 = arith.addf %80, %83 : vector<32x128xf32>
    %c0_30 = arith.constant 0 : index
    %c0_31 = arith.constant 0 : index
    %c0_32 = arith.constant 0 : index
    %85 = vector.load %arg5[%c0_30, %c0_31, %c0_32] : memref<4x32x1xf32, #tpu.memory_space<vmem>>, vector<1x32x1xf32>
    %86 = vector.shape_cast %85 : vector<1x32x1xf32> to vector<32x1xf32>
    %87 = vector.broadcast %86 : vector<32x1xf32> to vector<32x128xf32>
    %88 = arith.addf %84, %87 : vector<32x128xf32>
    %cst_33 = arith.constant 5.000000e-01 : f32
    %89 = vector.broadcast %cst_33 : f32 to vector<32x128xf32>
    %90 = arith.mulf %89, %88 : vector<32x128xf32>
    %cst_34 = arith.constant 0.707106769 : f32
    %91 = vector.broadcast %cst_34 : f32 to vector<32x128xf32>
    %92 = arith.mulf %88, %91 : vector<32x128xf32>
    %93 = math.absf %92 : vector<32x128xf32>
    %cst_35 = arith.constant 0.327591091 : f32
    %94 = vector.broadcast %cst_35 : f32 to vector<32x128xf32>
    %95 = arith.mulf %94, %93 : vector<32x128xf32>
    %cst_36 = arith.constant 1.000000e+00 : f32
    %96 = vector.broadcast %cst_36 : f32 to vector<32x128xf32>
    %97 = arith.addf %96, %95 : vector<32x128xf32>
    %cst_37 = arith.constant 1.000000e+00 : f32
    %98 = vector.broadcast %cst_37 : f32 to vector<32x128xf32>
    %99 = arith.divf %98, %97 : vector<32x128xf32>
    %cst_38 = arith.constant 1.06140542 : f32
    %100 = vector.broadcast %cst_38 : f32 to vector<32x128xf32>
    %101 = arith.mulf %99, %100 : vector<32x128xf32>
    %cst_39 = arith.constant -1.45315206 : f32
    %102 = vector.broadcast %cst_39 : f32 to vector<32x128xf32>
    %103 = arith.addf %102, %101 : vector<32x128xf32>
    %104 = arith.mulf %99, %103 : vector<32x128xf32>
    %cst_40 = arith.constant 1.42141378 : f32
    %105 = vector.broadcast %cst_40 : f32 to vector<32x128xf32>
    %106 = arith.addf %105, %104 : vector<32x128xf32>
    %107 = arith.mulf %99, %106 : vector<32x128xf32>
    %cst_41 = arith.constant -0.284496725 : f32
    %108 = vector.broadcast %cst_41 : f32 to vector<32x128xf32>
    %109 = arith.addf %108, %107 : vector<32x128xf32>
    %110 = arith.mulf %99, %109 : vector<32x128xf32>
    %cst_42 = arith.constant 0.254829586 : f32
    %111 = vector.broadcast %cst_42 : f32 to vector<32x128xf32>
    %112 = arith.addf %111, %110 : vector<32x128xf32>
    %113 = arith.mulf %99, %112 : vector<32x128xf32>
    %114 = arith.mulf %93, %93 : vector<32x128xf32>
    %cst_43 = arith.constant 0.000000e+00 : f32
    %115 = vector.broadcast %cst_43 : f32 to vector<32x128xf32>
    %116 = arith.subf %115, %114 : vector<32x128xf32>
    %117 = math.exp %116 : vector<32x128xf32>
    %118 = arith.mulf %113, %117 : vector<32x128xf32>
    %cst_44 = arith.constant 1.000000e+00 : f32
    %119 = vector.broadcast %cst_44 : f32 to vector<32x128xf32>
    %120 = arith.subf %119, %118 : vector<32x128xf32>
    %cst_45 = arith.constant 0.000000e+00 : f32
    %121 = vector.broadcast %cst_45 : f32 to vector<32x128xf32>
    %122 = arith.cmpf olt, %92, %121 : vector<32x128xf32>
    %cst_46 = arith.constant 0.000000e+00 : f32
    %123 = vector.broadcast %cst_46 : f32 to vector<32x128xf32>
    %124 = arith.subf %123, %120 : vector<32x128xf32>
    %125 = arith.select %122, %124, %120 : vector<32x128xi1>, vector<32x128xf32>
    %cst_47 = arith.constant 1.000000e+00 : f32
    %126 = vector.broadcast %cst_47 : f32 to vector<32x128xf32>
    %127 = arith.addf %126, %125 : vector<32x128xf32>
    %128 = arith.mulf %90, %127 : vector<32x128xf32>
    %c2 = arith.constant 2 : index
    %c0_48 = arith.constant 0 : index
    %c0_49 = arith.constant 0 : index
    %129 = vector.load %arg4[%c2, %c0_48, %c0_49] : memref<5x32x32xf32, #tpu.memory_space<vmem>>, vector<1x32x32xf32>
    %130 = vector.shape_cast %129 : vector<1x32x32xf32> to vector<32x32xf32>
    %cst_50 = arith.constant dense<0.000000e+00> : vector<32x128xf32>
    %131 = tpu.matmul %130, %128, %cst_50 {dimension_numbers = #tpu.dot_dimension_numbers<[1], [0], [0], [1], [0, 0, 1, 1], [], []>} : vector<32x32xf32>, vector<32x128xf32>, vector<32x128xf32> -> vector<32x128xf32>
    %c1_51 = arith.constant 1 : index
    %c0_52 = arith.constant 0 : index
    %c0_53 = arith.constant 0 : index
    %132 = vector.load %arg5[%c1_51, %c0_52, %c0_53] : memref<4x32x1xf32, #tpu.memory_space<vmem>>, vector<1x32x1xf32>
    %133 = vector.shape_cast %132 : vector<1x32x1xf32> to vector<32x1xf32>
    %134 = vector.broadcast %133 : vector<32x1xf32> to vector<32x128xf32>
    %135 = arith.addf %131, %134 : vector<32x128xf32>
    %cst_54 = arith.constant 5.000000e-01 : f32
    %136 = vector.broadcast %cst_54 : f32 to vector<32x128xf32>
    %137 = arith.mulf %136, %135 : vector<32x128xf32>
    %cst_55 = arith.constant 0.707106769 : f32
    %138 = vector.broadcast %cst_55 : f32 to vector<32x128xf32>
    %139 = arith.mulf %135, %138 : vector<32x128xf32>
    %140 = math.absf %139 : vector<32x128xf32>
    %cst_56 = arith.constant 0.327591091 : f32
    %141 = vector.broadcast %cst_56 : f32 to vector<32x128xf32>
    %142 = arith.mulf %141, %140 : vector<32x128xf32>
    %cst_57 = arith.constant 1.000000e+00 : f32
    %143 = vector.broadcast %cst_57 : f32 to vector<32x128xf32>
    %144 = arith.addf %143, %142 : vector<32x128xf32>
    %cst_58 = arith.constant 1.000000e+00 : f32
    %145 = vector.broadcast %cst_58 : f32 to vector<32x128xf32>
    %146 = arith.divf %145, %144 : vector<32x128xf32>
    %cst_59 = arith.constant 1.06140542 : f32
    %147 = vector.broadcast %cst_59 : f32 to vector<32x128xf32>
    %148 = arith.mulf %146, %147 : vector<32x128xf32>
    %cst_60 = arith.constant -1.45315206 : f32
    %149 = vector.broadcast %cst_60 : f32 to vector<32x128xf32>
    %150 = arith.addf %149, %148 : vector<32x128xf32>
    %151 = arith.mulf %146, %150 : vector<32x128xf32>
    %cst_61 = arith.constant 1.42141378 : f32
    %152 = vector.broadcast %cst_61 : f32 to vector<32x128xf32>
    %153 = arith.addf %152, %151 : vector<32x128xf32>
    %154 = arith.mulf %146, %153 : vector<32x128xf32>
    %cst_62 = arith.constant -0.284496725 : f32
    %155 = vector.broadcast %cst_62 : f32 to vector<32x128xf32>
    %156 = arith.addf %155, %154 : vector<32x128xf32>
    %157 = arith.mulf %146, %156 : vector<32x128xf32>
    %cst_63 = arith.constant 0.254829586 : f32
    %158 = vector.broadcast %cst_63 : f32 to vector<32x128xf32>
    %159 = arith.addf %158, %157 : vector<32x128xf32>
    %160 = arith.mulf %146, %159 : vector<32x128xf32>
    %161 = arith.mulf %140, %140 : vector<32x128xf32>
    %cst_64 = arith.constant 0.000000e+00 : f32
    %162 = vector.broadcast %cst_64 : f32 to vector<32x128xf32>
    %163 = arith.subf %162, %161 : vector<32x128xf32>
    %164 = math.exp %163 : vector<32x128xf32>
    %165 = arith.mulf %160, %164 : vector<32x128xf32>
    %cst_65 = arith.constant 1.000000e+00 : f32
    %166 = vector.broadcast %cst_65 : f32 to vector<32x128xf32>
    %167 = arith.subf %166, %165 : vector<32x128xf32>
    %cst_66 = arith.constant 0.000000e+00 : f32
    %168 = vector.broadcast %cst_66 : f32 to vector<32x128xf32>
    %169 = arith.cmpf olt, %139, %168 : vector<32x128xf32>
    %cst_67 = arith.constant 0.000000e+00 : f32
    %170 = vector.broadcast %cst_67 : f32 to vector<32x128xf32>
    %171 = arith.subf %170, %167 : vector<32x128xf32>
    %172 = arith.select %169, %171, %167 : vector<32x128xi1>, vector<32x128xf32>
    %cst_68 = arith.constant 1.000000e+00 : f32
    %173 = vector.broadcast %cst_68 : f32 to vector<32x128xf32>
    %174 = arith.addf %173, %172 : vector<32x128xf32>
    %175 = arith.mulf %137, %174 : vector<32x128xf32>
    %c3 = arith.constant 3 : index
    %c0_69 = arith.constant 0 : index
    %c0_70 = arith.constant 0 : index
    %176 = vector.load %arg4[%c3, %c0_69, %c0_70] : memref<5x32x32xf32, #tpu.memory_space<vmem>>, vector<1x32x32xf32>
    %177 = vector.shape_cast %176 : vector<1x32x32xf32> to vector<32x32xf32>
    %cst_71 = arith.constant dense<0.000000e+00> : vector<32x128xf32>
    %178 = tpu.matmul %177, %175, %cst_71 {dimension_numbers = #tpu.dot_dimension_numbers<[1], [0], [0], [1], [0, 0, 1, 1], [], []>} : vector<32x32xf32>, vector<32x128xf32>, vector<32x128xf32> -> vector<32x128xf32>
    %c2_72 = arith.constant 2 : index
    %c0_73 = arith.constant 0 : index
    %c0_74 = arith.constant 0 : index
    %179 = vector.load %arg5[%c2_72, %c0_73, %c0_74] : memref<4x32x1xf32, #tpu.memory_space<vmem>>, vector<1x32x1xf32>
    %180 = vector.shape_cast %179 : vector<1x32x1xf32> to vector<32x1xf32>
    %181 = vector.broadcast %180 : vector<32x1xf32> to vector<32x128xf32>
    %182 = arith.addf %178, %181 : vector<32x128xf32>
    %cst_75 = arith.constant 5.000000e-01 : f32
    %183 = vector.broadcast %cst_75 : f32 to vector<32x128xf32>
    %184 = arith.mulf %183, %182 : vector<32x128xf32>
    %cst_76 = arith.constant 0.707106769 : f32
    %185 = vector.broadcast %cst_76 : f32 to vector<32x128xf32>
    %186 = arith.mulf %182, %185 : vector<32x128xf32>
    %187 = math.absf %186 : vector<32x128xf32>
    %cst_77 = arith.constant 0.327591091 : f32
    %188 = vector.broadcast %cst_77 : f32 to vector<32x128xf32>
    %189 = arith.mulf %188, %187 : vector<32x128xf32>
    %cst_78 = arith.constant 1.000000e+00 : f32
    %190 = vector.broadcast %cst_78 : f32 to vector<32x128xf32>
    %191 = arith.addf %190, %189 : vector<32x128xf32>
    %cst_79 = arith.constant 1.000000e+00 : f32
    %192 = vector.broadcast %cst_79 : f32 to vector<32x128xf32>
    %193 = arith.divf %192, %191 : vector<32x128xf32>
    %cst_80 = arith.constant 1.06140542 : f32
    %194 = vector.broadcast %cst_80 : f32 to vector<32x128xf32>
    %195 = arith.mulf %193, %194 : vector<32x128xf32>
    %cst_81 = arith.constant -1.45315206 : f32
    %196 = vector.broadcast %cst_81 : f32 to vector<32x128xf32>
    %197 = arith.addf %196, %195 : vector<32x128xf32>
    %198 = arith.mulf %193, %197 : vector<32x128xf32>
    %cst_82 = arith.constant 1.42141378 : f32
    %199 = vector.broadcast %cst_82 : f32 to vector<32x128xf32>
    %200 = arith.addf %199, %198 : vector<32x128xf32>
    %201 = arith.mulf %193, %200 : vector<32x128xf32>
    %cst_83 = arith.constant -0.284496725 : f32
    %202 = vector.broadcast %cst_83 : f32 to vector<32x128xf32>
    %203 = arith.addf %202, %201 : vector<32x128xf32>
    %204 = arith.mulf %193, %203 : vector<32x128xf32>
    %cst_84 = arith.constant 0.254829586 : f32
    %205 = vector.broadcast %cst_84 : f32 to vector<32x128xf32>
    %206 = arith.addf %205, %204 : vector<32x128xf32>
    %207 = arith.mulf %193, %206 : vector<32x128xf32>
    %208 = arith.mulf %187, %187 : vector<32x128xf32>
    %cst_85 = arith.constant 0.000000e+00 : f32
    %209 = vector.broadcast %cst_85 : f32 to vector<32x128xf32>
    %210 = arith.subf %209, %208 : vector<32x128xf32>
    %211 = math.exp %210 : vector<32x128xf32>
    %212 = arith.mulf %207, %211 : vector<32x128xf32>
    %cst_86 = arith.constant 1.000000e+00 : f32
    %213 = vector.broadcast %cst_86 : f32 to vector<32x128xf32>
    %214 = arith.subf %213, %212 : vector<32x128xf32>
    %cst_87 = arith.constant 0.000000e+00 : f32
    %215 = vector.broadcast %cst_87 : f32 to vector<32x128xf32>
    %216 = arith.cmpf olt, %186, %215 : vector<32x128xf32>
    %cst_88 = arith.constant 0.000000e+00 : f32
    %217 = vector.broadcast %cst_88 : f32 to vector<32x128xf32>
    %218 = arith.subf %217, %214 : vector<32x128xf32>
    %219 = arith.select %216, %218, %214 : vector<32x128xi1>, vector<32x128xf32>
    %cst_89 = arith.constant 1.000000e+00 : f32
    %220 = vector.broadcast %cst_89 : f32 to vector<32x128xf32>
    %221 = arith.addf %220, %219 : vector<32x128xf32>
    %222 = arith.mulf %184, %221 : vector<32x128xf32>
    %c4 = arith.constant 4 : index
    %c0_90 = arith.constant 0 : index
    %c0_91 = arith.constant 0 : index
    %223 = vector.load %arg4[%c4, %c0_90, %c0_91] : memref<5x32x32xf32, #tpu.memory_space<vmem>>, vector<1x32x32xf32>
    %224 = vector.shape_cast %223 : vector<1x32x32xf32> to vector<32x32xf32>
    %cst_92 = arith.constant dense<0.000000e+00> : vector<32x128xf32>
    %225 = tpu.matmul %224, %222, %cst_92 {dimension_numbers = #tpu.dot_dimension_numbers<[1], [0], [0], [1], [0, 0, 1, 1], [], []>} : vector<32x32xf32>, vector<32x128xf32>, vector<32x128xf32> -> vector<32x128xf32>
    %c3_93 = arith.constant 3 : index
    %c0_94 = arith.constant 0 : index
    %c0_95 = arith.constant 0 : index
    %226 = vector.load %arg5[%c3_93, %c0_94, %c0_95] : memref<4x32x1xf32, #tpu.memory_space<vmem>>, vector<1x32x1xf32>
    %227 = vector.shape_cast %226 : vector<1x32x1xf32> to vector<32x1xf32>
    %228 = vector.broadcast %227 : vector<32x1xf32> to vector<32x128xf32>
    %229 = arith.addf %225, %228 : vector<32x128xf32>
    %cst_96 = arith.constant 5.000000e-01 : f32
    %230 = vector.broadcast %cst_96 : f32 to vector<32x128xf32>
    %231 = arith.mulf %230, %229 : vector<32x128xf32>
    %cst_97 = arith.constant 0.707106769 : f32
    %232 = vector.broadcast %cst_97 : f32 to vector<32x128xf32>
    %233 = arith.mulf %229, %232 : vector<32x128xf32>
    %234 = math.absf %233 : vector<32x128xf32>
    %cst_98 = arith.constant 0.327591091 : f32
    %235 = vector.broadcast %cst_98 : f32 to vector<32x128xf32>
    %236 = arith.mulf %235, %234 : vector<32x128xf32>
    %cst_99 = arith.constant 1.000000e+00 : f32
    %237 = vector.broadcast %cst_99 : f32 to vector<32x128xf32>
    %238 = arith.addf %237, %236 : vector<32x128xf32>
    %cst_100 = arith.constant 1.000000e+00 : f32
    %239 = vector.broadcast %cst_100 : f32 to vector<32x128xf32>
    %240 = arith.divf %239, %238 : vector<32x128xf32>
    %cst_101 = arith.constant 1.06140542 : f32
    %241 = vector.broadcast %cst_101 : f32 to vector<32x128xf32>
    %242 = arith.mulf %240, %241 : vector<32x128xf32>
    %cst_102 = arith.constant -1.45315206 : f32
    %243 = vector.broadcast %cst_102 : f32 to vector<32x128xf32>
    %244 = arith.addf %243, %242 : vector<32x128xf32>
    %245 = arith.mulf %240, %244 : vector<32x128xf32>
    %cst_103 = arith.constant 1.42141378 : f32
    %246 = vector.broadcast %cst_103 : f32 to vector<32x128xf32>
    %247 = arith.addf %246, %245 : vector<32x128xf32>
    %248 = arith.mulf %240, %247 : vector<32x128xf32>
    %cst_104 = arith.constant -0.284496725 : f32
    %249 = vector.broadcast %cst_104 : f32 to vector<32x128xf32>
    %250 = arith.addf %249, %248 : vector<32x128xf32>
    %251 = arith.mulf %240, %250 : vector<32x128xf32>
    %cst_105 = arith.constant 0.254829586 : f32
    %252 = vector.broadcast %cst_105 : f32 to vector<32x128xf32>
    %253 = arith.addf %252, %251 : vector<32x128xf32>
    %254 = arith.mulf %240, %253 : vector<32x128xf32>
    %255 = arith.mulf %234, %234 : vector<32x128xf32>
    %cst_106 = arith.constant 0.000000e+00 : f32
    %256 = vector.broadcast %cst_106 : f32 to vector<32x128xf32>
    %257 = arith.subf %256, %255 : vector<32x128xf32>
    %258 = math.exp %257 : vector<32x128xf32>
    %259 = arith.mulf %254, %258 : vector<32x128xf32>
    %cst_107 = arith.constant 1.000000e+00 : f32
    %260 = vector.broadcast %cst_107 : f32 to vector<32x128xf32>
    %261 = arith.subf %260, %259 : vector<32x128xf32>
    %cst_108 = arith.constant 0.000000e+00 : f32
    %262 = vector.broadcast %cst_108 : f32 to vector<32x128xf32>
    %263 = arith.cmpf olt, %233, %262 : vector<32x128xf32>
    %cst_109 = arith.constant 0.000000e+00 : f32
    %264 = vector.broadcast %cst_109 : f32 to vector<32x128xf32>
    %265 = arith.subf %264, %261 : vector<32x128xf32>
    %266 = arith.select %263, %265, %261 : vector<32x128xi1>, vector<32x128xf32>
    %cst_110 = arith.constant 1.000000e+00 : f32
    %267 = vector.broadcast %cst_110 : f32 to vector<32x128xf32>
    %268 = arith.addf %267, %266 : vector<32x128xf32>
    %269 = arith.mulf %231, %268 : vector<32x128xf32>
    %c0_111 = arith.constant 0 : index
    %c0_112 = arith.constant 0 : index
    %270 = vector.load %arg6[%c0_111, %c0_112] : memref<1x32xf32, #tpu.memory_space<vmem>>, vector<1x32xf32>
    %cst_113 = arith.constant dense<0.000000e+00> : vector<1x128xf32>
    %271 = tpu.matmul %270, %269, %cst_113 {dimension_numbers = #tpu.dot_dimension_numbers<[1], [0], [0], [1], [0, 0, 1, 1], [], []>} : vector<1x32xf32>, vector<32x128xf32>, vector<1x128xf32> -> vector<1x128xf32>
    %c0_114 = arith.constant 0 : index
    %c0_115 = arith.constant 0 : index
    %272 = vector.load %arg7[%c0_114, %c0_115] : memref<1x1xf32, #tpu.memory_space<vmem>>, vector<1x1xf32>
    %273 = vector.broadcast %272 : vector<1x1xf32> to vector<1x128xf32>
    %274 = arith.addf %271, %273 : vector<1x128xf32>
    %c0_116 = arith.constant 0 : index
    %c0_117 = arith.constant 0 : index
    %275 = vector.load %arg8[%c0_116, %c0_117] : memref<1x128xf32, #tpu.memory_space<vmem>>, vector<1x128xf32>
    tpu.vector_store %arg8[%c0_116, %c0_117], %274 {strides = array<i32>} : memref<1x128xf32, #tpu.memory_space<vmem>>, vector<1x128xf32>,
    return
  }
  func.func @transform_0(%arg0: i32) -> (i32, i32) {
    %c0_i32 = arith.constant 0 : i32
    %c0_i32_0 = arith.constant 0 : i32
    return %c0_i32, %arg0 : i32, i32
  }
  func.func @transform_1(%arg0: i32) -> (i32, i32) {
    %c0_i32 = arith.constant 0 : i32
    %c0_i32_0 = arith.constant 0 : i32
    %c0_i32_1 = arith.constant 0 : i32
    return %c0_i32, %c0_i32_0 : i32, i32
  }
  func.func @transform_2(%arg0: i32) -> (i32, i32) {
    %c0_i32 = arith.constant 0 : i32
    %c0_i32_0 = arith.constant 0 : i32
    %c0_i32_1 = arith.constant 0 : i32
    return %c0_i32, %c0_i32_0 : i32, i32
  }
  func.func @transform_3(%arg0: i32) -> (i32, i32, i32) {
    %c0_i32 = arith.constant 0 : i32
    %c0_i32_0 = arith.constant 0 : i32
    %c0_i32_1 = arith.constant 0 : i32
    %c0_i32_2 = arith.constant 0 : i32
    return %c0_i32, %c0_i32_0, %c0_i32_1 : i32, i32, i32
  }
  func.func @transform_4(%arg0: i32) -> (i32, i32, i32) {
    %c0_i32 = arith.constant 0 : i32
    %c0_i32_0 = arith.constant 0 : i32
    %c0_i32_1 = arith.constant 0 : i32
    %c0_i32_2 = arith.constant 0 : i32
    return %c0_i32, %c0_i32_0, %c0_i32_1 : i32, i32, i32
  }
  func.func @transform_5(%arg0: i32) -> (i32, i32) {
    %c0_i32 = arith.constant 0 : i32
    %c0_i32_0 = arith.constant 0 : i32
    %c0_i32_1 = arith.constant 0 : i32
    return %c0_i32, %c0_i32_0 : i32, i32
  }
  func.func @transform_6(%arg0: i32) -> (i32, i32) {
    %c0_i32 = arith.constant 0 : i32
    %c0_i32_0 = arith.constant 0 : i32
    %c0_i32_1 = arith.constant 0 : i32
    return %c0_i32, %c0_i32_0 : i32, i32
  }
  func.func @transform_7(%arg0: i32) -> (i32, i32) {
    %c0_i32 = arith.constant 0 : i32
    %c0_i32_0 = arith.constant 0 : i32
    return %c0_i32, %arg0 : i32, i32
  }
}

</mosaic_0001>

<llo_original>
// kernel: network_model_forward.1
$region0: #{network_model_forward.1}
  #allocation0 [shape = 'u32[]', space=smem, size = 0x4, offset = 0x4, fixed_abs, tag = 'smem constant byte address 0x4 - core index']
  #allocation1 [shape = 'u32[144,128]{1,0:T(1,128)}', space=vmem, size = 0x12000, scoped, tag = 'internal scratch']
  #allocation2 [shape = 'f32[1,1]{1,0:T(1,128)S(1)}', space=vmem, size = 0x200, scoped, tag = 'scoped memory for network_model_forward.1']
  %s0 = inlined_call_operand.vmem [shape: f32[2,128], index: 0, kind: input, shape index: {}]
  %s1 = inlined_call_operand.vmem [shape: f32[32,2], index: 1, kind: input, shape index: {}]
  %s2 = inlined_call_operand.vmem [shape: f32[32,1], index: 2, kind: input, shape index: {}]
  %s3 = inlined_call_operand.vmem [shape: f32[5,32,32], index: 3, kind: input, shape index: {}]
  %s4 = inlined_call_operand.vmem [shape: f32[4,32,1], index: 4, kind: input, shape index: {}]
  %s5 = inlined_call_operand.vmem [shape: f32[1,32], index: 5, kind: input, shape index: {}]
  %s6 = inlined_call_operand.<no memory space> [shape: f32[1,1], index: 6, kind: input, shape index: {}]
  %s7 = inlined_call_operand.vmem [shape: f32[1,128], index: 7, kind: output, shape index: {}]
  %s8 = sld [smem:[#allocation0]]
  $region38: #{network_model_forward.1} parent=0
    _
  %s10 = ssub.s32 1, %s8
  %s11 = scalar_select 0, %s10, %s8
  %v12 = vstv %s6
  %13 = vst [vmem:[#allocation2] sm:$0x1] %v12
  // Predicated region
  $region2: #{network_model_forward.1} parent=0 // pred_check
    _
  $region3: #{network_model_forward.1} parent=0 // pred_check_branch
    %15 = sbr.rel (0) target = $region5
  $region4: #{network_model_forward.1} parent=0 // pred_region
    _
  $region5: #{network_model_forward.1} parent=0 // pred_fallthru
    _
  // Predicated region
  $region6: #{network_model_forward.1} parent=0 // pred_check
    _
  $region7: #{network_model_forward.1} parent=0 // pred_check_branch
    %17 = sbr.rel (0) target = $region9
  $region8: #{network_model_forward.1} parent=0 // pred_region
    _
  $region9: #{network_model_forward.1} parent=0 // pred_fallthru
    _
  // Predicated region
  $region10: #{network_model_forward.1} parent=0 // pred_check
    _
  $region11: #{network_model_forward.1} parent=0 // pred_check_branch
    %19 = sbr.rel (0) target = $region13
  $region12: #{network_model_forward.1} parent=0 // pred_region
    _
  $region13: #{network_model_forward.1} parent=0 // pred_fallthru
    _
  // Predicated region
  $region14: #{network_model_forward.1} parent=0 // pred_check
    _
  $region15: #{network_model_forward.1} parent=0 // pred_check_branch
    %21 = sbr.rel (0) target = $region17
  $region16: #{network_model_forward.1} parent=0 // pred_region
    _
  $region17: #{network_model_forward.1} parent=0 // pred_fallthru
    _
  // Predicated region
  $region18: #{network_model_forward.1} parent=0 // pred_check
    _
  $region19: #{network_model_forward.1} parent=0 // pred_check_branch
    %23 = sbr.rel (0) target = $region21
  $region20: #{network_model_forward.1} parent=0 // pred_region
    _
  $region21: #{network_model_forward.1} parent=0 // pred_fallthru
    _
  // Predicated region
  $region22: #{network_model_forward.1} parent=0 // pred_check
    _
  $region23: #{network_model_forward.1} parent=0 // pred_check_branch
    %25 = sbr.rel (0) target = $region25
  $region24: #{network_model_forward.1} parent=0 // pred_region
    _
  $region25: #{network_model_forward.1} parent=0 // pred_fallthru
    _
  // Predicated region
  $region26: #{network_model_forward.1} parent=0 // pred_check
    _
  $region27: #{network_model_forward.1} parent=0 // pred_check_branch
    %27 = sbr.rel (0) target = $region29
  $region28: #{network_model_forward.1} parent=0 // pred_region
    _
  $region29: #{network_model_forward.1} parent=0 // pred_fallthru
    _
  %v28 = vld [vmem:[%s0] sm:$0x3]
  %v29 = vld [vmem:[%s1] sm:$0xff]
  %v30 = vld [vmem:[%s1 + $0x8] sm:$0xff]
  %v31 = vld [vmem:[%s1 + $0x10] sm:$0xff]
  %v32 = vld [vmem:[%s1 + $0x18] sm:$0xff]
  %34 = vset.pattern.permute.xlu0 0
  %35 = vperm.xlu0 %34, %v29
  %v36 = vpop.permute.xlu0 %35
  %39 = vset.pattern.permute.xlu0 0
  %40 = vperm.xlu0 %39, %v30
  %v41 = vpop.permute.xlu0 %40
  %44 = vset.pattern.permute.xlu0 0
  %45 = vperm.xlu0 %44, %v31
  %v46 = vpop.permute.xlu0 %45
  %49 = vset.pattern.permute.xlu0 0
  %50 = vperm.xlu0 %49, %v32
  %v51 = vpop.permute.xlu0 %50
  %v53 = vlaneseq
  %v54 = vshrl.u32 %v53, 7
  %v55 = vsub.s32 0, %v54
  %v56 = vrot.slane %v28, %v55
  %v57 = vmul.f32 %v36, %v56
  %v58 = vmul.f32 %v41, %v56
  %v59 = vmul.f32 %v46, %v56
  %v60 = vmul.f32 %v51, %v56
  %61 = vset.pattern.permute.xlu0 1
  %62 = vperm.xlu0 %61, %v29
  %v63 = vpop.permute.xlu0 %62
  %65 = vset.pattern.permute.xlu0 1
  %66 = vperm.xlu0 %65, %v30
  %v67 = vpop.permute.xlu0 %66
  %69 = vset.pattern.permute.xlu0 1
  %70 = vperm.xlu0 %69, %v31
  %v71 = vpop.permute.xlu0 %70
  %73 = vset.pattern.permute.xlu0 1
  %74 = vperm.xlu0 %73, %v32
  %v75 = vpop.permute.xlu0 %74
  %v77 = vlaneseq
  %v78 = vshrl.u32 %v77, 7
  %v79 = vsub.s32 1, %v78
  %v80 = vrot.slane %v28, %v79
  %v81 = vmul.f32 %v63, %v80
  %v82 = vmul.f32 %v67, %v80
  %v83 = vmul.f32 %v71, %v80
  %v84 = vmul.f32 %v75, %v80
  %v85 = vadd.f32 %v57, %v81
  %v86 = vadd.f32 %v58, %v82
  %v87 = vadd.f32 %v59, %v83
  %v88 = vadd.f32 %v60, %v84
  %v89 = vld [vmem:[%s2] sm:$0xff]
  %v90 = vld [vmem:[%s2 + $0x8] sm:$0xff]
  %v91 = vld [vmem:[%s2 + $0x10] sm:$0xff]
  %v92 = vld [vmem:[%s2 + $0x18] sm:$0xff]
  %94 = vset.pattern.permute.xlu0 0
  %95 = vperm.xlu0 %94, %v89
  %v96 = vpop.permute.xlu0 %95
  %99 = vset.pattern.permute.xlu0 0
  %100 = vperm.xlu0 %99, %v90
  %v101 = vpop.permute.xlu0 %100
  %104 = vset.pattern.permute.xlu0 0
  %105 = vperm.xlu0 %104, %v91
  %v106 = vpop.permute.xlu0 %105
  %109 = vset.pattern.permute.xlu0 0
  %110 = vperm.xlu0 %109, %v92
  %v111 = vpop.permute.xlu0 %110
  %v113 = vadd.f32 %v85, %v96
  %v114 = vadd.f32 %v86, %v101
  %v115 = vadd.f32 %v87, %v106
  %v116 = vadd.f32 %v88, %v111
  %v117 = vmul.f32 %v113, 0.63661975
  %v118 = vmul.f32 %v114, 0.63661975
  %v119 = vmul.f32 %v115, 0.63661975
  %v120 = vmul.f32 %v116, 0.63661975
  %v121 = vadd.f32 %v117, 0.5
  %v122 = vadd.f32 %v118, 0.5
  %v123 = vadd.f32 %v119, 0.5
  %v124 = vadd.f32 %v120, 0.5
  %v125 = vfloor.f32 %v121
  %v126 = vfloor.f32 %v122
  %v127 = vfloor.f32 %v123
  %v128 = vfloor.f32 %v124
  %v129 = vcvt.f32.s32.to.zero.pseudo %v125
  %v130 = vcvt.f32.s32.to.zero.pseudo %v126
  %v131 = vcvt.f32.s32.to.zero.pseudo %v127
  %v132 = vcvt.f32.s32.to.zero.pseudo %v128
  %v133 = vmul.f32 %v125, 1.5703125
  %v134 = vmul.f32 %v126, 1.5703125
  %v135 = vmul.f32 %v127, 1.5703125
  %v136 = vmul.f32 %v128, 1.5703125
  %v137 = vsub.f32 %v113, %v133
  %v138 = vsub.f32 %v114, %v134
  %v139 = vsub.f32 %v115, %v135
  %v140 = vsub.f32 %v116, %v136
  %v141 = vmul.f32 %v125, 0.0004837513
  %v142 = vmul.f32 %v126, 0.0004837513
  %v143 = vmul.f32 %v127, 0.0004837513
  %v144 = vmul.f32 %v128, 0.0004837513
  %v145 = vsub.f32 %v137, %v141
  %v146 = vsub.f32 %v138, %v142
  %v147 = vsub.f32 %v139, %v143
  %v148 = vsub.f32 %v140, %v144
  %v149 = vmul.f32 %v125, 7.54979e-08
  %v150 = vmul.f32 %v126, 7.54979e-08
  %v151 = vmul.f32 %v127, 7.54979e-08
  %v152 = vmul.f32 %v128, 7.54979e-08
  %v153 = vsub.f32 %v145, %v149
  %v154 = vsub.f32 %v146, %v150
  %v155 = vsub.f32 %v147, %v151
  %v156 = vsub.f32 %v148, %v152
  %v157 = vmul.f32 %v153, %v153
  %v158 = vmul.f32 %v154, %v154
  %v159 = vmul.f32 %v155, %v155
  %v160 = vmul.f32 %v156, %v156
  %v161 = vmul.f32 %v153, %v157
  %v162 = vmul.f32 %v154, %v158
  %v163 = vmul.f32 %v155, %v159
  %v164 = vmul.f32 %v156, %v160
  %v165 = vmul.f32 %v157, -0.00019515296
  %v166 = vmul.f32 %v158, -0.00019515296
  %v167 = vmul.f32 %v159, -0.00019515296
  %v168 = vmul.f32 %v160, -0.00019515296
  %v169 = vadd.f32 %v165, 0.008332161
  %v170 = vadd.f32 %v166, 0.008332161
  %v171 = vadd.f32 %v167, 0.008332161
  %v172 = vadd.f32 %v168, 0.008332161
  %v173 = vmul.f32 %v157, %v169
  %v174 = vmul.f32 %v158, %v170
  %v175 = vmul.f32 %v159, %v171
  %v176 = vmul.f32 %v160, %v172
  %v177 = vadd.f32 %v173, -0.16666655
  %v178 = vadd.f32 %v174, -0.16666655
  %v179 = vadd.f32 %v175, -0.16666655
  %v180 = vadd.f32 %v176, -0.16666655
  %v181 = vmul.f32 %v161, %v177
  %v182 = vmul.f32 %v162, %v178
  %v183 = vmul.f32 %v163, %v179
  %v184 = vmul.f32 %v164, %v180
  %v185 = vadd.f32 %v153, %v181
  %v186 = vadd.f32 %v154, %v182
  %v187 = vadd.f32 %v155, %v183
  %v188 = vadd.f32 %v156, %v184
  %v189 = vmul.f32 %v157, 0.5
  %v190 = vmul.f32 %v158, 0.5
  %v191 = vmul.f32 %v159, 0.5
  %v192 = vmul.f32 %v160, 0.5
  %v193 = vsub.f32 1.0, %v189
  %v194 = vsub.f32 1.0, %v190
  %v195 = vsub.f32 1.0, %v191
  %v196 = vsub.f32 1.0, %v192
  %v197 = vmul.f32 %v157, %v157
  %v198 = vmul.f32 %v158, %v158
  %v199 = vmul.f32 %v159, %v159
  %v200 = vmul.f32 %v160, %v160
  %v201 = vmul.f32 %v157, 2.4433157e-05
  %v202 = vmul.f32 %v158, 2.4433157e-05
  %v203 = vmul.f32 %v159, 2.4433157e-05
  %v204 = vmul.f32 %v160, 2.4433157e-05
  %v205 = vadd.f32 %v201, -0.0013887316
  %v206 = vadd.f32 %v202, -0.0013887316
  %v207 = vadd.f32 %v203, -0.0013887316
  %v208 = vadd.f32 %v204, -0.0013887316
  %v209 = vmul.f32 %v157, %v205
  %v210 = vmul.f32 %v158, %v206
  %v211 = vmul.f32 %v159, %v207
  %v212 = vmul.f32 %v160, %v208
  %v213 = vadd.f32 %v209, 0.041666646
  %v214 = vadd.f32 %v210, 0.041666646
  %v215 = vadd.f32 %v211, 0.041666646
  %v216 = vadd.f32 %v212, 0.041666646
  %v217 = vmul.f32 %v197, %v213
  %v218 = vmul.f32 %v198, %v214
  %v219 = vmul.f32 %v199, %v215
  %v220 = vmul.f32 %v200, %v216
  %v221 = vadd.f32 %v193, %v217
  %v222 = vadd.f32 %v194, %v218
  %v223 = vadd.f32 %v195, %v219
  %v224 = vadd.f32 %v196, %v220
  %v225 = vand.u32 %v129, 1
  %v226 = vand.u32 %v130, 1
  %v227 = vand.u32 %v131, 1
  %v228 = vand.u32 %v132, 1
  %vm229 = vcmp.ne.s32.totalorder %v225, 0
  %vm230 = vcmp.ne.s32.totalorder %v226, 0
  %vm231 = vcmp.ne.s32.totalorder %v227, 0
  %vm232 = vcmp.ne.s32.totalorder %v228, 0
  %v233 = vsel %vm229, %v221, %v185
  %v234 = vsel %vm230, %v222, %v186
  %v235 = vsel %vm231, %v223, %v187
  %v236 = vsel %vm232, %v224, %v188
  %v237 = vsel %vm229, %v185, %v221
  %v238 = vsel %vm230, %v186, %v222
  %v239 = vsel %vm231, %v187, %v223
  %v240 = vsel %vm232, %v188, %v224
  %v241 = vand.u32 %v129, 2
  %v242 = vand.u32 %v130, 2
  %v243 = vand.u32 %v131, 2
  %v244 = vand.u32 %v132, 2
  %vm245 = vcmp.ne.s32.totalorder %v241, 0
  %vm246 = vcmp.ne.s32.totalorder %v242, 0
  %vm247 = vcmp.ne.s32.totalorder %v243, 0
  %vm248 = vcmp.ne.s32.totalorder %v244, 0
  %v249 = vsub.f32 0.0, %v233
  %v250 = vsub.f32 0.0, %v234
  %v251 = vsub.f32 0.0, %v235
  %v252 = vsub.f32 0.0, %v236
  %v253 = vsel %vm245, %v249, %v233
  %v254 = vsel %vm246, %v250, %v234
  %v255 = vsel %vm247, %v251, %v235
  %v256 = vsel %vm248, %v252, %v236
  %v257 = vadd.s32 %v129, 1
  %v258 = vadd.s32 %v130, 1
  %v259 = vadd.s32 %v131, 1
  %v260 = vadd.s32 %v132, 1
  %v261 = vand.u32 %v257, 2
  %v262 = vand.u32 %v258, 2
  %v263 = vand.u32 %v259, 2
  %v264 = vand.u32 %v260, 2
  %vm265 = vcmp.ne.s32.totalorder %v261, 0
  %vm266 = vcmp.ne.s32.totalorder %v262, 0
  %vm267 = vcmp.ne.s32.totalorder %v263, 0
  %vm268 = vcmp.ne.s32.totalorder %v264, 0
  %v269 = vsub.f32 0.0, %v237
  %v270 = vsub.f32 0.0, %v238
  %v271 = vsub.f32 0.0, %v239
  %v272 = vsub.f32 0.0, %v240
  %v273 = vsel %vm265, %v269, %v237
  %v274 = vsel %vm266, %v270, %v238
  %v275 = vsel %vm267, %v271, %v239
  %v276 = vsel %vm268, %v272, %v240
  %v277 = vld [vmem:[%s3] sm:$0xff]
  %v278 = vld [vmem:[%s3 + $0x8] sm:$0xff]
  %v279 = vld [vmem:[%s3 + $0x10] sm:$0xff]
  %v280 = vld [vmem:[%s3 + $0x18] sm:$0xff]
  %s281 = scalar_lea.vmem %s3, 32
  %v282 = vld [vmem:[%s281] sm:$0xff]
  %v283 = vld [vmem:[%s281 + $0x8] sm:$0xff]
  %v284 = vld [vmem:[%s281 + $0x10] sm:$0xff]
  %v285 = vld [vmem:[%s281 + $0x18] sm:$0xff]
  %vm286 = vcmask 261120
  %v288 = vsel %vm286, %v282, 0
  %v291 = vsel %vm286, %v283, 0
  %v294 = vsel %vm286, %v284, 0
  %v297 = vsel %vm286, %v285, 0
  %299 = vmatprep.subr.mxu0 0.0
  %300 = vmatpush1.msra.mxu0 %v273
  %301 = vmatprep.subr.mxu0 0.0
  %302 = vmatpush1.msra.mxu0 %v274
  %303 = vmatprep.subr.mxu0 0.0
  %304 = vmatpush1.msra.mxu0 %v275
  %305 = vmatprep.subr.mxu0 0.0
  %306 = vmatpush1.msra.mxu0 %v276
  %307 = vmatprep.subr.mxu0 0.0
  %308 = vmatpush1.msra.mxu0 0.0
  %309 = vmatprep.subr.mxu0 0.0
  %310 = vmatpush1.msra.mxu0 0.0
  %311 = vmatprep.subr.mxu0 0.0
  %312 = vmatpush1.msra.mxu0 0.0
  %313 = vmatprep.subr.mxu0 0.0
  %314 = vmatpush1.msra.mxu0 0.0
  %315 = vmatprep.subr.mxu0 0.0
  %316 = vmatpush1.msra.mxu0 0.0
  %317 = vmatprep.subr.mxu0 0.0
  %318 = vmatpush1.msra.mxu0 0.0
  %319 = vmatprep.subr.mxu0 0.0
  %320 = vmatpush1.msra.mxu0 0.0
  %321 = vmatprep.subr.mxu0 0.0
  %322 = vmatpush1.msra.mxu0 0.0
  %323 = vmatprep.subr.mxu0 0.0
  %324 = vmatpush1.msra.mxu0 0.0
  %325 = vmatprep.subr.mxu0 0.0
  %326 = vmatpush1.msra.mxu0 0.0
  %327 = vmatprep.subr.mxu0 0.0
  %328 = vmatpush1.msra.mxu0 0.0
  %329 = vmatprep.subr.mxu0 0.0
  %330 = vmatpush1.msra.mxu0 0.0
  %331 = vmatprep.subr.mxu0 0.0
  %332 = vmatpush1.msra.mxu0 0.0
  %333 = vmatprep.subr.mxu0 0.0
  %334 = vmatpush1.msra.mxu0 0.0
  %335 = vmatprep.subr.mxu0 0.0
  %336 = vmatpush1.msra.mxu0 0.0
  %337 = vmatprep.subr.mxu0 0.0
  %338 = vmatpush1.msra.mxu0 0.0
  %339 = vmatprep.subr.mxu0 0.0
  %340 = vmatpush1.msra.mxu0 0.0
  %341 = vmatprep.subr.mxu0 0.0
  %342 = vmatpush1.msra.mxu0 0.0
  %343 = vmatprep.subr.mxu0 0.0
  %344 = vmatpush1.msra.mxu0 0.0
  %345 = vmatprep.subr.mxu0 0.0
  %346 = vmatpush1.msra.mxu0 0.0
  %347 = vmatprep.subr.mxu0 0.0
  %348 = vmatpush1.msra.mxu0 0.0
  %349 = vmatprep.subr.mxu0 0.0
  %350 = vmatpush1.msra.mxu0 0.0
  %351 = vmatprep.subr.mxu0 0.0
  %352 = vmatpush1.msra.mxu0 0.0
  %353 = vmatprep.subr.mxu0 0.0
  %354 = vmatpush1.msra.mxu0 0.0
  %355 = vmatprep.subr.mxu0 0.0
  %356 = vmatpush1.msra.mxu0 0.0
  %357 = vmatprep.subr.mxu0 0.0
  %358 = vmatpush1.msra.mxu0 0.0
  %359 = vmatprep.subr.mxu0 0.0
  %360 = vmatpush1.msra.mxu0 0.0
  %361 = vmatprep.subr.mxu0 0.0
  %362 = vmatpush1.msra.mxu0 0.0
  %363 = vmatprep.mubr.f32.mxu0 0.0
  %364 = vmatmul.mubr.f32.gmra.mrb[0].mxu0 %v288
  %v365 = vpop.f32.mrb[0].mxu0
  %v366 = vadd.f32 0.0, %v365
  %v367 = vpop.f32.mrb[0].mxu0
  %368 = vmatprep.mubr.f32.mxu0 0.0
  %369 = vmatmul.mubr.f32.gmra.mrb[0].mxu0 %v291
  %v370 = vpop.f32.mrb[0].mxu0
  %v371 = vadd.f32 0.0, %v370
  %v372 = vpop.f32.mrb[0].mxu0
  %373 = vmatprep.mubr.f32.mxu0 0.0
  %374 = vmatmul.mubr.f32.gmra.mrb[0].mxu0 %v294
  %v375 = vpop.f32.mrb[0].mxu0
  %v376 = vadd.f32 0.0, %v375
  %v377 = vpop.f32.mrb[0].mxu0
  %378 = vmatprep.mubr.f32.mxu0 0.0
  %379 = vmatmul.mubr.f32.gmra.mrb[0].mxu0 %v297
  %v380 = vpop.f32.mrb[0].mxu0
  %v381 = vadd.f32 0.0, %v380
  %v382 = vpop.f32.mrb[0].mxu0
  %383 = vdwg.mxu0
  %v385 = vsel %vm286, %v277, 0
  %v388 = vsel %vm286, %v278, 0
  %v391 = vsel %vm286, %v279, 0
  %v394 = vsel %vm286, %v280, 0
  %396 = vmatprep.subr.mxu0 0.0
  %397 = vmatpush1.msra.mxu0 %v253
  %398 = vmatprep.subr.mxu0 0.0
  %399 = vmatpush1.msra.mxu0 %v254
  %400 = vmatprep.subr.mxu0 0.0
  %401 = vmatpush1.msra.mxu0 %v255
  %402 = vmatprep.subr.mxu0 0.0
  %403 = vmatpush1.msra.mxu0 %v256
  %404 = vmatprep.subr.mxu0 0.0
  %405 = vmatpush1.msra.mxu0 0.0
  %406 = vmatprep.subr.mxu0 0.0
  %407 = vmatpush1.msra.mxu0 0.0
  %408 = vmatprep.subr.mxu0 0.0
  %409 = vmatpush1.msra.mxu0 0.0
  %410 = vmatprep.subr.mxu0 0.0
  %411 = vmatpush1.msra.mxu0 0.0
  %412 = vmatprep.subr.mxu0 0.0
  %413 = vmatpush1.msra.mxu0 0.0
  %414 = vmatprep.subr.mxu0 0.0
  %415 = vmatpush1.msra.mxu0 0.0
  %416 = vmatprep.subr.mxu0 0.0
  %417 = vmatpush1.msra.mxu0 0.0
  %418 = vmatprep.subr.mxu0 0.0
  %419 = vmatpush1.msra.mxu0 0.0
  %420 = vmatprep.subr.mxu0 0.0
  %421 = vmatpush1.msra.mxu0 0.0
  %422 = vmatprep.subr.mxu0 0.0
  %423 = vmatpush1.msra.mxu0 0.0
  %424 = vmatprep.subr.mxu0 0.0
  %425 = vmatpush1.msra.mxu0 0.0
  %426 = vmatprep.subr.mxu0 0.0
  %427 = vmatpush1.msra.mxu0 0.0
  %428 = vmatprep.subr.mxu0 0.0
  %429 = vmatpush1.msra.mxu0 0.0
  %430 = vmatprep.subr.mxu0 0.0
  %431 = vmatpush1.msra.mxu0 0.0
  %432 = vmatprep.subr.mxu0 0.0
  %433 = vmatpush1.msra.mxu0 0.0
  %434 = vmatprep.subr.mxu0 0.0
  %435 = vmatpush1.msra.mxu0 0.0
  %436 = vmatprep.subr.mxu0 0.0
  %437 = vmatpush1.msra.mxu0 0.0
  %438 = vmatprep.subr.mxu0 0.0
  %439 = vmatpush1.msra.mxu0 0.0
  %440 = vmatprep.subr.mxu0 0.0
  %441 = vmatpush1.msra.mxu0 0.0
  %442 = vmatprep.subr.mxu0 0.0
  %443 = vmatpush1.msra.mxu0 0.0
  %444 = vmatprep.subr.mxu0 0.0
  %445 = vmatpush1.msra.mxu0 0.0
  %446 = vmatprep.subr.mxu0 0.0
  %447 = vmatpush1.msra.mxu0 0.0
  %448 = vmatprep.subr.mxu0 0.0
  %449 = vmatpush1.msra.mxu0 0.0
  %450 = vmatprep.subr.mxu0 0.0
  %451 = vmatpush1.msra.mxu0 0.0
  %452 = vmatprep.subr.mxu0 0.0
  %453 = vmatpush1.msra.mxu0 0.0
  %454 = vmatprep.subr.mxu0 0.0
  %455 = vmatpush1.msra.mxu0 0.0
  %456 = vmatprep.subr.mxu0 0.0
  %457 = vmatpush1.msra.mxu0 0.0
  %458 = vmatprep.subr.mxu0 0.0
  %459 = vmatpush1.msra.mxu0 0.0
  %460 = vmatprep.mubr.f32.mxu0 0.0
  %461 = vmatmul.mubr.f32.gmra.mrb[0].mxu0 %v385
  %v462 = vpop.f32.mrb[0].mxu0
  %v463 = vadd.f32 %v366, %v462
  %v464 = vpop.f32.mrb[0].mxu0
  %465 = vmatprep.mubr.f32.mxu0 0.0
  %466 = vmatmul.mubr.f32.gmra.mrb[0].mxu0 %v388
  %v467 = vpop.f32.mrb[0].mxu0
  %v468 = vadd.f32 %v371, %v467
  %v469 = vpop.f32.mrb[0].mxu0
  %470 = vmatprep.mubr.f32.mxu0 0.0
  %471 = vmatmul.mubr.f32.gmra.mrb[0].mxu0 %v391
  %v472 = vpop.f32.mrb[0].mxu0
  %v473 = vadd.f32 %v376, %v472
  %v474 = vpop.f32.mrb[0].mxu0
  %475 = vmatprep.mubr.f32.mxu0 0.0
  %476 = vmatmul.mubr.f32.gmra.mrb[0].mxu0 %v394
  %v477 = vpop.f32.mrb[0].mxu0
  %v478 = vadd.f32 %v381, %v477
  %v479 = vpop.f32.mrb[0].mxu0
  %480 = vdwg.mxu0
  %v481 = vld [vmem:[%s4] sm:$0xff]
  %v482 = vld [vmem:[%s4 + $0x8] sm:$0xff]
  %v483 = vld [vmem:[%s4 + $0x10] sm:$0xff]
  %v484 = vld [vmem:[%s4 + $0x18] sm:$0xff]
  %486 = vset.pattern.permute.xlu0 0
  %487 = vperm.xlu0 %486, %v481
  %v488 = vpop.permute.xlu0 %487
  %491 = vset.pattern.permute.xlu0 0
  %492 = vperm.xlu0 %491, %v482
  %v493 = vpop.permute.xlu0 %492
  %496 = vset.pattern.permute.xlu0 0
  %497 = vperm.xlu0 %496, %v483
  %v498 = vpop.permute.xlu0 %497
  %501 = vset.pattern.permute.xlu0 0
  %502 = vperm.xlu0 %501, %v484
  %v503 = vpop.permute.xlu0 %502
  %v505 = vadd.f32 %v463, %v488
  %v506 = vadd.f32 %v468, %v493
  %v507 = vadd.f32 %v473, %v498
  %v508 = vadd.f32 %v478, %v503
  %v509 = vmul.f32 %v505, 0.5
  %v510 = vmul.f32 %v506, 0.5
  %v511 = vmul.f32 %v507, 0.5
  %v512 = vmul.f32 %v508, 0.5
  %v513 = vmul.f32 %v505, 0.70710677
  %v514 = vmul.f32 %v506, 0.70710677
  %v515 = vmul.f32 %v507, 0.70710677
  %v516 = vmul.f32 %v508, 0.70710677
  %v517 = vand.u32 2147483647, %v513
  %v518 = vand.u32 2147483647, %v514
  %v519 = vand.u32 2147483647, %v515
  %v520 = vand.u32 2147483647, %v516
  %v521 = vmul.f32 %v517, 0.3275911
  %v522 = vmul.f32 %v518, 0.3275911
  %v523 = vmul.f32 %v519, 0.3275911
  %v524 = vmul.f32 %v520, 0.3275911
  %v525 = vadd.f32 %v521, 1.0
  %v526 = vadd.f32 %v522, 1.0
  %v527 = vadd.f32 %v523, 1.0
  %v528 = vadd.f32 %v524, 1.0
  %v529 = vrcp.pop %v525
  %v530 = vmul.f32 1.0, %v529
  %v531 = vrcp.pop %v526
  %v532 = vmul.f32 1.0, %v531
  %v533 = vrcp.pop %v527
  %v534 = vmul.f32 1.0, %v533
  %v535 = vrcp.pop %v528
  %v536 = vmul.f32 1.0, %v535
  %v537 = vmul.f32 %v530, 1.0614054
  %v538 = vmul.f32 %v532, 1.0614054
  %v539 = vmul.f32 %v534, 1.0614054
  %v540 = vmul.f32 %v536, 1.0614054
  %v541 = vadd.f32 %v537, -1.4531521
  %v542 = vadd.f32 %v538, -1.4531521
  %v543 = vadd.f32 %v539, -1.4531521
  %v544 = vadd.f32 %v540, -1.4531521
  %v545 = vmul.f32 %v530, %v541
  %v546 = vmul.f32 %v532, %v542
  %v547 = vmul.f32 %v534, %v543
  %v548 = vmul.f32 %v536, %v544
  %v549 = vadd.f32 %v545, 1.4214138
  %v550 = vadd.f32 %v546, 1.4214138
  %v551 = vadd.f32 %v547, 1.4214138
  %v552 = vadd.f32 %v548, 1.4214138
  %v553 = vmul.f32 %v530, %v549
  %v554 = vmul.f32 %v532, %v550
  %v555 = vmul.f32 %v534, %v551
  %v556 = vmul.f32 %v536, %v552
  %v557 = vadd.f32 %v553, -0.28449672
  %v558 = vadd.f32 %v554, -0.28449672
  %v559 = vadd.f32 %v555, -0.28449672
  %v560 = vadd.f32 %v556, -0.28449672
  %v561 = vmul.f32 %v530, %v557
  %v562 = vmul.f32 %v532, %v558
  %v563 = vmul.f32 %v534, %v559
  %v564 = vmul.f32 %v536, %v560
  %v565 = vadd.f32 %v561, 0.2548296
  %v566 = vadd.f32 %v562, 0.2548296
  %v567 = vadd.f32 %v563, 0.2548296
  %v568 = vadd.f32 %v564, 0.2548296
  %v569 = vmul.f32 %v530, %v565
  %v570 = vmul.f32 %v532, %v566
  %v571 = vmul.f32 %v534, %v567
  %v572 = vmul.f32 %v536, %v568
  %v573 = vmul.f32 %v517, %v517
  %v574 = vmul.f32 %v518, %v518
  %v575 = vmul.f32 %v519, %v519
  %v576 = vmul.f32 %v520, %v520
  %v577 = vsub.f32 0.0, %v573
  %v578 = vsub.f32 0.0, %v574
  %v579 = vsub.f32 0.0, %v575
  %v580 = vsub.f32 0.0, %v576
  %v581 = vmul.f32 %v577, 1.442695
  %v582 = vpow.pop %v581
  %v583 = vmul.f32 %v578, 1.442695
  %v584 = vpow.pop %v583
  %v585 = vmul.f32 %v579, 1.442695
  %v586 = vpow.pop %v585
  %v587 = vmul.f32 %v580, 1.442695
  %v588 = vpow.pop %v587
  %v589 = vmul.f32 %v569, %v582
  %v590 = vmul.f32 %v570, %v584
  %v591 = vmul.f32 %v571, %v586
  %v592 = vmul.f32 %v572, %v588
  %v593 = vsub.f32 1.0, %v589
  %v594 = vsub.f32 1.0, %v590
  %v595 = vsub.f32 1.0, %v591
  %v596 = vsub.f32 1.0, %v592
  %vm597 = vcmp.lt.f32.partialorder %v513, 0.0
  %vm598 = vcmp.lt.f32.partialorder %v514, 0.0
  %vm599 = vcmp.lt.f32.partialorder %v515, 0.0
  %vm600 = vcmp.lt.f32.partialorder %v516, 0.0
  %v601 = vsub.f32 0.0, %v593
  %v602 = vsub.f32 0.0, %v594
  %v603 = vsub.f32 0.0, %v595
  %v604 = vsub.f32 0.0, %v596
  %v605 = vsel %vm597, %v601, %v593
  %v606 = vsel %vm598, %v602, %v594
  %v607 = vsel %vm599, %v603, %v595
  %v608 = vsel %vm600, %v604, %v596
  %v609 = vadd.f32 %v605, 1.0
  %v610 = vadd.f32 %v606, 1.0
  %v611 = vadd.f32 %v607, 1.0
  %v612 = vadd.f32 %v608, 1.0
  %v613 = vmul.f32 %v509, %v609
  %v614 = vmul.f32 %v510, %v610
  %v615 = vmul.f32 %v511, %v611
  %v616 = vmul.f32 %v512, %v612
  %s617 = scalar_lea.vmem %s3, 64
  %v618 = vld [vmem:[%s617] sm:$0xff]
  %v619 = vld [vmem:[%s617 + $0x8] sm:$0xff]
  %v620 = vld [vmem:[%s617 + $0x10] sm:$0xff]
  %v621 = vld [vmem:[%s617 + $0x18] sm:$0xff]
  %s622 = scalar_lea.vmem %s4, 32
  %v623 = vld [vmem:[%s622] sm:$0xff]
  %v624 = vld [vmem:[%s622 + $0x8] sm:$0xff]
  %v625 = vld [vmem:[%s622 + $0x10] sm:$0xff]
  %v626 = vld [vmem:[%s622 + $0x18] sm:$0xff]
  %628 = vset.pattern.permute.xlu0 0
  %629 = vperm.xlu0 %628, %v623
  %v630 = vpop.permute.xlu0 %629
  %633 = vset.pattern.permute.xlu0 0
  %634 = vperm.xlu0 %633, %v624
  %v635 = vpop.permute.xlu0 %634
  %638 = vset.pattern.permute.xlu0 0
  %639 = vperm.xlu0 %638, %v625
  %v640 = vpop.permute.xlu0 %639
  %643 = vset.pattern.permute.xlu0 0
  %644 = vperm.xlu0 %643, %v626
  %v645 = vpop.permute.xlu0 %644
  %v648 = vsel %vm286, %v618, 0
  %v651 = vsel %vm286, %v619, 0
  %v654 = vsel %vm286, %v620, 0
  %v657 = vsel %vm286, %v621, 0
  %659 = vmatprep.subr.mxu0 0.0
  %660 = vmatpush1.msra.mxu0 %v613
  %661 = vmatprep.subr.mxu0 0.0
  %662 = vmatpush1.msra.mxu0 %v614
  %663 = vmatprep.subr.mxu0 0.0
  %664 = vmatpush1.msra.mxu0 %v615
  %665 = vmatprep.subr.mxu0 0.0
  %666 = vmatpush1.msra.mxu0 %v616
  %667 = vmatprep.subr.mxu0 0.0
  %668 = vmatpush1.msra.mxu0 0.0
  %669 = vmatprep.subr.mxu0 0.0
  %670 = vmatpush1.msra.mxu0 0.0
  %671 = vmatprep.subr.mxu0 0.0
  %672 = vmatpush1.msra.mxu0 0.0
  %673 = vmatprep.subr.mxu0 0.0
  %674 = vmatpush1.msra.mxu0 0.0
  %675 = vmatprep.subr.mxu0 0.0
  %676 = vmatpush1.msra.mxu0 0.0
  %677 = vmatprep.subr.mxu0 0.0
  %678 = vmatpush1.msra.mxu0 0.0
  %679 = vmatprep.subr.mxu0 0.0
  %680 = vmatpush1.msra.mxu0 0.0
  %681 = vmatprep.subr.mxu0 0.0
  %682 = vmatpush1.msra.mxu0 0.0
  %683 = vmatprep.subr.mxu0 0.0
  %684 = vmatpush1.msra.mxu0 0.0
  %685 = vmatprep.subr.mxu0 0.0
  %686 = vmatpush1.msra.mxu0 0.0
  %687 = vmatprep.subr.mxu0 0.0
  %688 = vmatpush1.msra.mxu0 0.0
  %689 = vmatprep.subr.mxu0 0.0
  %690 = vmatpush1.msra.mxu0 0.0
  %691 = vmatprep.subr.mxu0 0.0
  %692 = vmatpush1.msra.mxu0 0.0
  %693 = vmatprep.subr.mxu0 0.0
  %694 = vmatpush1.msra.mxu0 0.0
  %695 = vmatprep.subr.mxu0 0.0
  %696 = vmatpush1.msra.mxu0 0.0
  %697 = vmatprep.subr.mxu0 0.0
  %698 = vmatpush1.msra.mxu0 0.0
  %699 = vmatprep.subr.mxu0 0.0
  %700 = vmatpush1.msra.mxu0 0.0
  %701 = vmatprep.subr.mxu0 0.0
  %702 = vmatpush1.msra.mxu0 0.0
  %703 = vmatprep.subr.mxu0 0.0
  %704 = vmatpush1.msra.mxu0 0.0
  %705 = vmatprep.subr.mxu0 0.0
  %706 = vmatpush1.msra.mxu0 0.0
  %707 = vmatprep.subr.mxu0 0.0
  %708 = vmatpush1.msra.mxu0 0.0
  %709 = vmatprep.subr.mxu0 0.0
  %710 = vmatpush1.msra.mxu0 0.0
  %711 = vmatprep.subr.mxu0 0.0
  %712 = vmatpush1.msra.mxu0 0.0
  %713 = vmatprep.subr.mxu0 0.0
  %714 = vmatpush1.msra.mxu0 0.0
  %715 = vmatprep.subr.mxu0 0.0
  %716 = vmatpush1.msra.mxu0 0.0
  %717 = vmatprep.subr.mxu0 0.0
  %718 = vmatpush1.msra.mxu0 0.0
  %719 = vmatprep.subr.mxu0 0.0
  %720 = vmatpush1.msra.mxu0 0.0
  %721 = vmatprep.subr.mxu0 0.0
  %722 = vmatpush1.msra.mxu0 0.0
  %723 = vmatprep.mubr.f32.mxu0 0.0
  %724 = vmatmul.mubr.f32.gmra.mrb[0].mxu0 %v648
  %v725 = vpop.f32.mrb[0].mxu0
  %v726 = vadd.f32 %v630, %v725
  %v727 = vpop.f32.mrb[0].mxu0
  %728 = vmatprep.mubr.f32.mxu0 0.0
  %729 = vmatmul.mubr.f32.gmra.mrb[0].mxu0 %v651
  %v730 = vpop.f32.mrb[0].mxu0
  %v731 = vadd.f32 %v635, %v730
  %v732 = vpop.f32.mrb[0].mxu0
  %733 = vmatprep.mubr.f32.mxu0 0.0
  %734 = vmatmul.mubr.f32.gmra.mrb[0].mxu0 %v654
  %v735 = vpop.f32.mrb[0].mxu0
  %v736 = vadd.f32 %v640, %v735
  %v737 = vpop.f32.mrb[0].mxu0
  %738 = vmatprep.mubr.f32.mxu0 0.0
  %739 = vmatmul.mubr.f32.gmra.mrb[0].mxu0 %v657
  %v740 = vpop.f32.mrb[0].mxu0
  %v741 = vadd.f32 %v645, %v740
  %v742 = vpop.f32.mrb[0].mxu0
  %743 = vdwg.mxu0
  %v744 = vmul.f32 %v726, 0.5
  %v745 = vmul.f32 %v731, 0.5
  %v746 = vmul.f32 %v736, 0.5
  %v747 = vmul.f32 %v741, 0.5
  %v748 = vmul.f32 %v726, 0.70710677
  %v749 = vmul.f32 %v731, 0.70710677
  %v750 = vmul.f32 %v736, 0.70710677
  %v751 = vmul.f32 %v741, 0.70710677
  %v752 = vand.u32 2147483647, %v748
  %v753 = vand.u32 2147483647, %v749
  %v754 = vand.u32 2147483647, %v750
  %v755 = vand.u32 2147483647, %v751
  %v756 = vmul.f32 %v752, 0.3275911
  %v757 = vmul.f32 %v753, 0.3275911
  %v758 = vmul.f32 %v754, 0.3275911
  %v759 = vmul.f32 %v755, 0.3275911
  %v760 = vadd.f32 %v756, 1.0
  %v761 = vadd.f32 %v757, 1.0
  %v762 = vadd.f32 %v758, 1.0
  %v763 = vadd.f32 %v759, 1.0
  %v764 = vrcp.pop %v760
  %v765 = vmul.f32 1.0, %v764
  %v766 = vrcp.pop %v761
  %v767 = vmul.f32 1.0, %v766
  %v768 = vrcp.pop %v762
  %v769 = vmul.f32 1.0, %v768
  %v770 = vrcp.pop %v763
  %v771 = vmul.f32 1.0, %v770
  %v772 = vmul.f32 %v765, 1.0614054
  %v773 = vmul.f32 %v767, 1.0614054
  %v774 = vmul.f32 %v769, 1.0614054
  %v775 = vmul.f32 %v771, 1.0614054
  %v776 = vadd.f32 %v772, -1.4531521
  %v777 = vadd.f32 %v773, -1.4531521
  %v778 = vadd.f32 %v774, -1.4531521
  %v779 = vadd.f32 %v775, -1.4531521
  %v780 = vmul.f32 %v765, %v776
  %v781 = vmul.f32 %v767, %v777
  %v782 = vmul.f32 %v769, %v778
  %v783 = vmul.f32 %v771, %v779
  %v784 = vadd.f32 %v780, 1.4214138
  %v785 = vadd.f32 %v781, 1.4214138
  %v786 = vadd.f32 %v782, 1.4214138
  %v787 = vadd.f32 %v783, 1.4214138
  %v788 = vmul.f32 %v765, %v784
  %v789 = vmul.f32 %v767, %v785
  %v790 = vmul.f32 %v769, %v786
  %v791 = vmul.f32 %v771, %v787
  %v792 = vadd.f32 %v788, -0.28449672
  %v793 = vadd.f32 %v789, -0.28449672
  %v794 = vadd.f32 %v790, -0.28449672
  %v795 = vadd.f32 %v791, -0.28449672
  %v796 = vmul.f32 %v765, %v792
  %v797 = vmul.f32 %v767, %v793
  %v798 = vmul.f32 %v769, %v794
  %v799 = vmul.f32 %v771, %v795
  %v800 = vadd.f32 %v796, 0.2548296
  %v801 = vadd.f32 %v797, 0.2548296
  %v802 = vadd.f32 %v798, 0.2548296
  %v803 = vadd.f32 %v799, 0.2548296
  %v804 = vmul.f32 %v765, %v800
  %v805 = vmul.f32 %v767, %v801
  %v806 = vmul.f32 %v769, %v802
  %v807 = vmul.f32 %v771, %v803
  %v808 = vmul.f32 %v752, %v752
  %v809 = vmul.f32 %v753, %v753
  %v810 = vmul.f32 %v754, %v754
  %v811 = vmul.f32 %v755, %v755
  %v812 = vsub.f32 0.0, %v808
  %v813 = vsub.f32 0.0, %v809
  %v814 = vsub.f32 0.0, %v810
  %v815 = vsub.f32 0.0, %v811
  %v816 = vmul.f32 %v812, 1.442695
  %v817 = vpow.pop %v816
  %v818 = vmul.f32 %v813, 1.442695
  %v819 = vpow.pop %v818
  %v820 = vmul.f32 %v814, 1.442695
  %v821 = vpow.pop %v820
  %v822 = vmul.f32 %v815, 1.442695
  %v823 = vpow.pop %v822
  %v824 = vmul.f32 %v804, %v817
  %v825 = vmul.f32 %v805, %v819
  %v826 = vmul.f32 %v806, %v821
  %v827 = vmul.f32 %v807, %v823
  %v828 = vsub.f32 1.0, %v824
  %v829 = vsub.f32 1.0, %v825
  %v830 = vsub.f32 1.0, %v826
  %v831 = vsub.f32 1.0, %v827
  %vm832 = vcmp.lt.f32.partialorder %v748, 0.0
  %vm833 = vcmp.lt.f32.partialorder %v749, 0.0
  %vm834 = vcmp.lt.f32.partialorder %v750, 0.0
  %vm835 = vcmp.lt.f32.partialorder %v751, 0.0
  %v836 = vsub.f32 0.0, %v828
  %v837 = vsub.f32 0.0, %v829
  %v838 = vsub.f32 0.0, %v830
  %v839 = vsub.f32 0.0, %v831
  %v840 = vsel %vm832, %v836, %v828
  %v841 = vsel %vm833, %v837, %v829
  %v842 = vsel %vm834, %v838, %v830
  %v843 = vsel %vm835, %v839, %v831
  %v844 = vadd.f32 %v840, 1.0
  %v845 = vadd.f32 %v841, 1.0
  %v846 = vadd.f32 %v842, 1.0
  %v847 = vadd.f32 %v843, 1.0
  %v848 = vmul.f32 %v744, %v844
  %v849 = vmul.f32 %v745, %v845
  %v850 = vmul.f32 %v746, %v846
  %v851 = vmul.f32 %v747, %v847
  %s852 = scalar_lea.vmem %s3, 96
  %v853 = vld [vmem:[%s852] sm:$0xff]
  %v854 = vld [vmem:[%s852 + $0x8] sm:$0xff]
  %v855 = vld [vmem:[%s852 + $0x10] sm:$0xff]
  %v856 = vld [vmem:[%s852 + $0x18] sm:$0xff]
  %s857 = scalar_lea.vmem %s4, 64
  %v858 = vld [vmem:[%s857] sm:$0xff]
  %v859 = vld [vmem:[%s857 + $0x8] sm:$0xff]
  %v860 = vld [vmem:[%s857 + $0x10] sm:$0xff]
  %v861 = vld [vmem:[%s857 + $0x18] sm:$0xff]
  %863 = vset.pattern.permute.xlu0 0
  %864 = vperm.xlu0 %863, %v858
  %v865 = vpop.permute.xlu0 %864
  %868 = vset.pattern.permute.xlu0 0
  %869 = vperm.xlu0 %868, %v859
  %v870 = vpop.permute.xlu0 %869
  %873 = vset.pattern.permute.xlu0 0
  %874 = vperm.xlu0 %873, %v860
  %v875 = vpop.permute.xlu0 %874
  %878 = vset.pattern.permute.xlu0 0
  %879 = vperm.xlu0 %878, %v861
  %v880 = vpop.permute.xlu0 %879
  %v883 = vsel %vm286, %v853, 0
  %v886 = vsel %vm286, %v854, 0
  %v889 = vsel %vm286, %v855, 0
  %v892 = vsel %vm286, %v856, 0
  %894 = vmatprep.subr.mxu0 0.0
  %895 = vmatpush1.msra.mxu0 %v848
  %896 = vmatprep.subr.mxu0 0.0
  %897 = vmatpush1.msra.mxu0 %v849
  %898 = vmatprep.subr.mxu0 0.0
  %899 = vmatpush1.msra.mxu0 %v850
  %900 = vmatprep.subr.mxu0 0.0
  %901 = vmatpush1.msra.mxu0 %v851
  %902 = vmatprep.subr.mxu0 0.0
  %903 = vmatpush1.msra.mxu0 0.0
  %904 = vmatprep.subr.mxu0 0.0
  %905 = vmatpush1.msra.mxu0 0.0
  %906 = vmatprep.subr.mxu0 0.0
  %907 = vmatpush1.msra.mxu0 0.0
  %908 = vmatprep.subr.mxu0 0.0
  %909 = vmatpush1.msra.mxu0 0.0
  %910 = vmatprep.subr.mxu0 0.0
  %911 = vmatpush1.msra.mxu0 0.0
  %912 = vmatprep.subr.mxu0 0.0
  %913 = vmatpush1.msra.mxu0 0.0
  %914 = vmatprep.subr.mxu0 0.0
  %915 = vmatpush1.msra.mxu0 0.0
  %916 = vmatprep.subr.mxu0 0.0
  %917 = vmatpush1.msra.mxu0 0.0
  %918 = vmatprep.subr.mxu0 0.0
  %919 = vmatpush1.msra.mxu0 0.0
  %920 = vmatprep.subr.mxu0 0.0
  %921 = vmatpush1.msra.mxu0 0.0
  %922 = vmatprep.subr.mxu0 0.0
  %923 = vmatpush1.msra.mxu0 0.0
  %924 = vmatprep.subr.mxu0 0.0
  %925 = vmatpush1.msra.mxu0 0.0
  %926 = vmatprep.subr.mxu0 0.0
  %927 = vmatpush1.msra.mxu0 0.0
  %928 = vmatprep.subr.mxu0 0.0
  %929 = vmatpush1.msra.mxu0 0.0
  %930 = vmatprep.subr.mxu0 0.0
  %931 = vmatpush1.msra.mxu0 0.0
  %932 = vmatprep.subr.mxu0 0.0
  %933 = vmatpush1.msra.mxu0 0.0
  %934 = vmatprep.subr.mxu0 0.0
  %935 = vmatpush1.msra.mxu0 0.0
  %936 = vmatprep.subr.mxu0 0.0
  %937 = vmatpush1.msra.mxu0 0.0
  %938 = vmatprep.subr.mxu0 0.0
  %939 = vmatpush1.msra.mxu0 0.0
  %940 = vmatprep.subr.mxu0 0.0
  %941 = vmatpush1.msra.mxu0 0.0
  %942 = vmatprep.subr.mxu0 0.0
  %943 = vmatpush1.msra.mxu0 0.0
  %944 = vmatprep.subr.mxu0 0.0
  %945 = vmatpush1.msra.mxu0 0.0
  %946 = vmatprep.subr.mxu0 0.0
  %947 = vmatpush1.msra.mxu0 0.0
  %948 = vmatprep.subr.mxu0 0.0
  %949 = vmatpush1.msra.mxu0 0.0
  %950 = vmatprep.subr.mxu0 0.0
  %951 = vmatpush1.msra.mxu0 0.0
  %952 = vmatprep.subr.mxu0 0.0
  %953 = vmatpush1.msra.mxu0 0.0
  %954 = vmatprep.subr.mxu0 0.0
  %955 = vmatpush1.msra.mxu0 0.0
  %956 = vmatprep.subr.mxu0 0.0
  %957 = vmatpush1.msra.mxu0 0.0
  %958 = vmatprep.mubr.f32.mxu0 0.0
  %959 = vmatmul.mubr.f32.gmra.mrb[0].mxu0 %v883
  %v960 = vpop.f32.mrb[0].mxu0
  %v961 = vadd.f32 %v865, %v960
  %v962 = vpop.f32.mrb[0].mxu0
  %963 = vmatprep.mubr.f32.mxu0 0.0
  %964 = vmatmul.mubr.f32.gmra.mrb[0].mxu0 %v886
  %v965 = vpop.f32.mrb[0].mxu0
  %v966 = vadd.f32 %v870, %v965
  %v967 = vpop.f32.mrb[0].mxu0
  %968 = vmatprep.mubr.f32.mxu0 0.0
  %969 = vmatmul.mubr.f32.gmra.mrb[0].mxu0 %v889
  %v970 = vpop.f32.mrb[0].mxu0
  %v971 = vadd.f32 %v875, %v970
  %v972 = vpop.f32.mrb[0].mxu0
  %973 = vmatprep.mubr.f32.mxu0 0.0
  %974 = vmatmul.mubr.f32.gmra.mrb[0].mxu0 %v892
  %v975 = vpop.f32.mrb[0].mxu0
  %v976 = vadd.f32 %v880, %v975
  %v977 = vpop.f32.mrb[0].mxu0
  %978 = vdwg.mxu0
  %v979 = vmul.f32 %v961, 0.5
  %v980 = vmul.f32 %v966, 0.5
  %v981 = vmul.f32 %v971, 0.5
  %v982 = vmul.f32 %v976, 0.5
  %v983 = vmul.f32 %v961, 0.70710677
  %v984 = vmul.f32 %v966, 0.70710677
  %v985 = vmul.f32 %v971, 0.70710677
  %v986 = vmul.f32 %v976, 0.70710677
  %v987 = vand.u32 2147483647, %v983
  %v988 = vand.u32 2147483647, %v984
  %v989 = vand.u32 2147483647, %v985
  %v990 = vand.u32 2147483647, %v986
  %v991 = vmul.f32 %v987, 0.3275911
  %v992 = vmul.f32 %v988, 0.3275911
  %v993 = vmul.f32 %v989, 0.3275911
  %v994 = vmul.f32 %v990, 0.3275911
  %v995 = vadd.f32 %v991, 1.0
  %v996 = vadd.f32 %v992, 1.0
  %v997 = vadd.f32 %v993, 1.0
  %v998 = vadd.f32 %v994, 1.0
  %v999 = vrcp.pop %v995
  %v1000 = vmul.f32 1.0, %v999
  %v1001 = vrcp.pop %v996
  %v1002 = vmul.f32 1.0, %v1001
  %v1003 = vrcp.pop %v997
  %v1004 = vmul.f32 1.0, %v1003
  %v1005 = vrcp.pop %v998
  %v1006 = vmul.f32 1.0, %v1005
  %v1007 = vmul.f32 %v1000, 1.0614054
  %v1008 = vmul.f32 %v1002, 1.0614054
  %v1009 = vmul.f32 %v1004, 1.0614054
  %v1010 = vmul.f32 %v1006, 1.0614054
  %v1011 = vadd.f32 %v1007, -1.4531521
  %v1012 = vadd.f32 %v1008, -1.4531521
  %v1013 = vadd.f32 %v1009, -1.4531521
  %v1014 = vadd.f32 %v1010, -1.4531521
  %v1015 = vmul.f32 %v1000, %v1011
  %v1016 = vmul.f32 %v1002, %v1012
  %v1017 = vmul.f32 %v1004, %v1013
  %v1018 = vmul.f32 %v1006, %v1014
  %v1019 = vadd.f32 %v1015, 1.4214138
  %v1020 = vadd.f32 %v1016, 1.4214138
  %v1021 = vadd.f32 %v1017, 1.4214138
  %v1022 = vadd.f32 %v1018, 1.4214138
  %v1023 = vmul.f32 %v1000, %v1019
  %v1024 = vmul.f32 %v1002, %v1020
  %v1025 = vmul.f32 %v1004, %v1021
  %v1026 = vmul.f32 %v1006, %v1022
  %v1027 = vadd.f32 %v1023, -0.28449672
  %v1028 = vadd.f32 %v1024, -0.28449672
  %v1029 = vadd.f32 %v1025, -0.28449672
  %v1030 = vadd.f32 %v1026, -0.28449672
  %v1031 = vmul.f32 %v1000, %v1027
  %v1032 = vmul.f32 %v1002, %v1028
  %v1033 = vmul.f32 %v1004, %v1029
  %v1034 = vmul.f32 %v1006, %v1030
  %v1035 = vadd.f32 %v1031, 0.2548296
  %v1036 = vadd.f32 %v1032, 0.2548296
  %v1037 = vadd.f32 %v1033, 0.2548296
  %v1038 = vadd.f32 %v1034, 0.2548296
  %v1039 = vmul.f32 %v1000, %v1035
  %v1040 = vmul.f32 %v1002, %v1036
  %v1041 = vmul.f32 %v1004, %v1037
  %v1042 = vmul.f32 %v1006, %v1038
  %v1043 = vmul.f32 %v987, %v987
  %v1044 = vmul.f32 %v988, %v988
  %v1045 = vmul.f32 %v989, %v989
  %v1046 = vmul.f32 %v990, %v990
  %v1047 = vsub.f32 0.0, %v1043
  %v1048 = vsub.f32 0.0, %v1044
  %v1049 = vsub.f32 0.0, %v1045
  %v1050 = vsub.f32 0.0, %v1046
  %v1051 = vmul.f32 %v1047, 1.442695
  %v1052 = vpow.pop %v1051
  %v1053 = vmul.f32 %v1048, 1.442695
  %v1054 = vpow.pop %v1053
  %v1055 = vmul.f32 %v1049, 1.442695
  %v1056 = vpow.pop %v1055
  %v1057 = vmul.f32 %v1050, 1.442695
  %v1058 = vpow.pop %v1057
  %v1059 = vmul.f32 %v1039, %v1052
  %v1060 = vmul.f32 %v1040, %v1054
  %v1061 = vmul.f32 %v1041, %v1056
  %v1062 = vmul.f32 %v1042, %v1058
  %v1063 = vsub.f32 1.0, %v1059
  %v1064 = vsub.f32 1.0, %v1060
  %v1065 = vsub.f32 1.0, %v1061
  %v1066 = vsub.f32 1.0, %v1062
  %vm1067 = vcmp.lt.f32.partialorder %v983, 0.0
  %vm1068 = vcmp.lt.f32.partialorder %v984, 0.0
  %vm1069 = vcmp.lt.f32.partialorder %v985, 0.0
  %vm1070 = vcmp.lt.f32.partialorder %v986, 0.0
  %v1071 = vsub.f32 0.0, %v1063
  %v1072 = vsub.f32 0.0, %v1064
  %v1073 = vsub.f32 0.0, %v1065
  %v1074 = vsub.f32 0.0, %v1066
  %v1075 = vsel %vm1067, %v1071, %v1063
  %v1076 = vsel %vm1068, %v1072, %v1064
  %v1077 = vsel %vm1069, %v1073, %v1065
  %v1078 = vsel %vm1070, %v1074, %v1066
  %v1079 = vadd.f32 %v1075, 1.0
  %v1080 = vadd.f32 %v1076, 1.0
  %v1081 = vadd.f32 %v1077, 1.0
  %v1082 = vadd.f32 %v1078, 1.0
  %v1083 = vmul.f32 %v979, %v1079
  %v1084 = vmul.f32 %v980, %v1080
  %v1085 = vmul.f32 %v981, %v1081
  %v1086 = vmul.f32 %v982, %v1082
  %s1087 = scalar_lea.vmem %s3, 128
  %v1088 = vld [vmem:[%s1087] sm:$0xff]
  %v1089 = vld [vmem:[%s1087 + $0x8] sm:$0xff]
  %v1090 = vld [vmem:[%s1087 + $0x10] sm:$0xff]
  %v1091 = vld [vmem:[%s1087 + $0x18] sm:$0xff]
  %s1092 = scalar_lea.vmem %s4, 96
  %v1093 = vld [vmem:[%s1092] sm:$0xff]
  %v1094 = vld [vmem:[%s1092 + $0x8] sm:$0xff]
  %v1095 = vld [vmem:[%s1092 + $0x10] sm:$0xff]
  %v1096 = vld [vmem:[%s1092 + $0x18] sm:$0xff]
  %1098 = vset.pattern.permute.xlu0 0
  %1099 = vperm.xlu0 %1098, %v1093
  %v1100 = vpop.permute.xlu0 %1099
  %1103 = vset.pattern.permute.xlu0 0
  %1104 = vperm.xlu0 %1103, %v1094
  %v1105 = vpop.permute.xlu0 %1104
  %1108 = vset.pattern.permute.xlu0 0
  %1109 = vperm.xlu0 %1108, %v1095
  %v1110 = vpop.permute.xlu0 %1109
  %1113 = vset.pattern.permute.xlu0 0
  %1114 = vperm.xlu0 %1113, %v1096
  %v1115 = vpop.permute.xlu0 %1114
  %v1118 = vsel %vm286, %v1088, 0
  %v1121 = vsel %vm286, %v1089, 0
  %v1124 = vsel %vm286, %v1090, 0
  %v1127 = vsel %vm286, %v1091, 0
  %1129 = vmatprep.subr.mxu0 0.0
  %1130 = vmatpush1.msra.mxu0 %v1083
  %1131 = vmatprep.subr.mxu0 0.0
  %1132 = vmatpush1.msra.mxu0 %v1084
  %1133 = vmatprep.subr.mxu0 0.0
  %1134 = vmatpush1.msra.mxu0 %v1085
  %1135 = vmatprep.subr.mxu0 0.0
  %1136 = vmatpush1.msra.mxu0 %v1086
  %1137 = vmatprep.subr.mxu0 0.0
  %1138 = vmatpush1.msra.mxu0 0.0
  %1139 = vmatprep.subr.mxu0 0.0
  %1140 = vmatpush1.msra.mxu0 0.0
  %1141 = vmatprep.subr.mxu0 0.0
  %1142 = vmatpush1.msra.mxu0 0.0
  %1143 = vmatprep.subr.mxu0 0.0
  %1144 = vmatpush1.msra.mxu0 0.0
  %1145 = vmatprep.subr.mxu0 0.0
  %1146 = vmatpush1.msra.mxu0 0.0
  %1147 = vmatprep.subr.mxu0 0.0
  %1148 = vmatpush1.msra.mxu0 0.0
  %1149 = vmatprep.subr.mxu0 0.0
  %1150 = vmatpush1.msra.mxu0 0.0
  %1151 = vmatprep.subr.mxu0 0.0
  %1152 = vmatpush1.msra.mxu0 0.0
  %1153 = vmatprep.subr.mxu0 0.0
  %1154 = vmatpush1.msra.mxu0 0.0
  %1155 = vmatprep.subr.mxu0 0.0
  %1156 = vmatpush1.msra.mxu0 0.0
  %1157 = vmatprep.subr.mxu0 0.0
  %1158 = vmatpush1.msra.mxu0 0.0
  %1159 = vmatprep.subr.mxu0 0.0
  %1160 = vmatpush1.msra.mxu0 0.0
  %1161 = vmatprep.subr.mxu0 0.0
  %1162 = vmatpush1.msra.mxu0 0.0
  %1163 = vmatprep.subr.mxu0 0.0
  %1164 = vmatpush1.msra.mxu0 0.0
  %1165 = vmatprep.subr.mxu0 0.0
  %1166 = vmatpush1.msra.mxu0 0.0
  %1167 = vmatprep.subr.mxu0 0.0
  %1168 = vmatpush1.msra.mxu0 0.0
  %1169 = vmatprep.subr.mxu0 0.0
  %1170 = vmatpush1.msra.mxu0 0.0
  %1171 = vmatprep.subr.mxu0 0.0
  %1172 = vmatpush1.msra.mxu0 0.0
  %1173 = vmatprep.subr.mxu0 0.0
  %1174 = vmatpush1.msra.mxu0 0.0
  %1175 = vmatprep.subr.mxu0 0.0
  %1176 = vmatpush1.msra.mxu0 0.0
  %1177 = vmatprep.subr.mxu0 0.0
  %1178 = vmatpush1.msra.mxu0 0.0
  %1179 = vmatprep.subr.mxu0 0.0
  %1180 = vmatpush1.msra.mxu0 0.0
  %1181 = vmatprep.subr.mxu0 0.0
  %1182 = vmatpush1.msra.mxu0 0.0
  %1183 = vmatprep.subr.mxu0 0.0
  %1184 = vmatpush1.msra.mxu0 0.0
  %1185 = vmatprep.subr.mxu0 0.0
  %1186 = vmatpush1.msra.mxu0 0.0
  %1187 = vmatprep.subr.mxu0 0.0
  %1188 = vmatpush1.msra.mxu0 0.0
  %1189 = vmatprep.subr.mxu0 0.0
  %1190 = vmatpush1.msra.mxu0 0.0
  %1191 = vmatprep.subr.mxu0 0.0
  %1192 = vmatpush1.msra.mxu0 0.0
  %1193 = vmatprep.mubr.f32.mxu0 0.0
  %1194 = vmatmul.mubr.f32.gmra.mrb[0].mxu0 %v1118
  %v1195 = vpop.f32.mrb[0].mxu0
  %v1196 = vadd.f32 %v1100, %v1195
  %v1197 = vpop.f32.mrb[0].mxu0
  %1198 = vmatprep.mubr.f32.mxu0 0.0
  %1199 = vmatmul.mubr.f32.gmra.mrb[0].mxu0 %v1121
  %v1200 = vpop.f32.mrb[0].mxu0
  %v1201 = vadd.f32 %v1105, %v1200
  %v1202 = vpop.f32.mrb[0].mxu0
  %1203 = vmatprep.mubr.f32.mxu0 0.0
  %1204 = vmatmul.mubr.f32.gmra.mrb[0].mxu0 %v1124
  %v1205 = vpop.f32.mrb[0].mxu0
  %v1206 = vadd.f32 %v1110, %v1205
  %v1207 = vpop.f32.mrb[0].mxu0
  %1208 = vmatprep.mubr.f32.mxu0 0.0
  %1209 = vmatmul.mubr.f32.gmra.mrb[0].mxu0 %v1127
  %v1210 = vpop.f32.mrb[0].mxu0
  %v1211 = vadd.f32 %v1115, %v1210
  %v1212 = vpop.f32.mrb[0].mxu0
  %1213 = vdwg.mxu0
  %v1214 = vmul.f32 %v1196, 0.5
  %v1215 = vmul.f32 %v1201, 0.5
  %v1216 = vmul.f32 %v1206, 0.5
  %v1217 = vmul.f32 %v1211, 0.5
  %v1218 = vmul.f32 %v1196, 0.70710677
  %v1219 = vmul.f32 %v1201, 0.70710677
  %v1220 = vmul.f32 %v1206, 0.70710677
  %v1221 = vmul.f32 %v1211, 0.70710677
  %v1222 = vand.u32 2147483647, %v1218
  %v1223 = vand.u32 2147483647, %v1219
  %v1224 = vand.u32 2147483647, %v1220
  %v1225 = vand.u32 2147483647, %v1221
  %v1226 = vmul.f32 %v1222, 0.3275911
  %v1227 = vmul.f32 %v1223, 0.3275911
  %v1228 = vmul.f32 %v1224, 0.3275911
  %v1229 = vmul.f32 %v1225, 0.3275911
  %v1230 = vadd.f32 %v1226, 1.0
  %v1231 = vadd.f32 %v1227, 1.0
  %v1232 = vadd.f32 %v1228, 1.0
  %v1233 = vadd.f32 %v1229, 1.0
  %v1234 = vrcp.pop %v1230
  %v1235 = vmul.f32 1.0, %v1234
  %v1236 = vrcp.pop %v1231
  %v1237 = vmul.f32 1.0, %v1236
  %v1238 = vrcp.pop %v1232
  %v1239 = vmul.f32 1.0, %v1238
  %v1240 = vrcp.pop %v1233
  %v1241 = vmul.f32 1.0, %v1240
  %v1242 = vmul.f32 %v1235, 1.0614054
  %v1243 = vmul.f32 %v1237, 1.0614054
  %v1244 = vmul.f32 %v1239, 1.0614054
  %v1245 = vmul.f32 %v1241, 1.0614054
  %v1246 = vadd.f32 %v1242, -1.4531521
  %v1247 = vadd.f32 %v1243, -1.4531521
  %v1248 = vadd.f32 %v1244, -1.4531521
  %v1249 = vadd.f32 %v1245, -1.4531521
  %v1250 = vmul.f32 %v1235, %v1246
  %v1251 = vmul.f32 %v1237, %v1247
  %v1252 = vmul.f32 %v1239, %v1248
  %v1253 = vmul.f32 %v1241, %v1249
  %v1254 = vadd.f32 %v1250, 1.4214138
  %v1255 = vadd.f32 %v1251, 1.4214138
  %v1256 = vadd.f32 %v1252, 1.4214138
  %v1257 = vadd.f32 %v1253, 1.4214138
  %v1258 = vmul.f32 %v1235, %v1254
  %v1259 = vmul.f32 %v1237, %v1255
  %v1260 = vmul.f32 %v1239, %v1256
  %v1261 = vmul.f32 %v1241, %v1257
  %v1262 = vadd.f32 %v1258, -0.28449672
  %v1263 = vadd.f32 %v1259, -0.28449672
  %v1264 = vadd.f32 %v1260, -0.28449672
  %v1265 = vadd.f32 %v1261, -0.28449672
  %v1266 = vmul.f32 %v1235, %v1262
  %v1267 = vmul.f32 %v1237, %v1263
  %v1268 = vmul.f32 %v1239, %v1264
  %v1269 = vmul.f32 %v1241, %v1265
  %v1270 = vadd.f32 %v1266, 0.2548296
  %v1271 = vadd.f32 %v1267, 0.2548296
  %v1272 = vadd.f32 %v1268, 0.2548296
  %v1273 = vadd.f32 %v1269, 0.2548296
  %v1274 = vmul.f32 %v1235, %v1270
  %v1275 = vmul.f32 %v1237, %v1271
  %v1276 = vmul.f32 %v1239, %v1272
  %v1277 = vmul.f32 %v1241, %v1273
  %v1278 = vmul.f32 %v1222, %v1222
  %v1279 = vmul.f32 %v1223, %v1223
  %v1280 = vmul.f32 %v1224, %v1224
  %v1281 = vmul.f32 %v1225, %v1225
  %v1282 = vsub.f32 0.0, %v1278
  %v1283 = vsub.f32 0.0, %v1279
  %v1284 = vsub.f32 0.0, %v1280
  %v1285 = vsub.f32 0.0, %v1281
  %v1286 = vmul.f32 %v1282, 1.442695
  %v1287 = vpow.pop %v1286
  %v1288 = vmul.f32 %v1283, 1.442695
  %v1289 = vpow.pop %v1288
  %v1290 = vmul.f32 %v1284, 1.442695
  %v1291 = vpow.pop %v1290
  %v1292 = vmul.f32 %v1285, 1.442695
  %v1293 = vpow.pop %v1292
  %v1294 = vmul.f32 %v1274, %v1287
  %v1295 = vmul.f32 %v1275, %v1289
  %v1296 = vmul.f32 %v1276, %v1291
  %v1297 = vmul.f32 %v1277, %v1293
  %v1298 = vsub.f32 1.0, %v1294
  %v1299 = vsub.f32 1.0, %v1295
  %v1300 = vsub.f32 1.0, %v1296
  %v1301 = vsub.f32 1.0, %v1297
  %vm1302 = vcmp.lt.f32.partialorder %v1218, 0.0
  %vm1303 = vcmp.lt.f32.partialorder %v1219, 0.0
  %vm1304 = vcmp.lt.f32.partialorder %v1220, 0.0
  %vm1305 = vcmp.lt.f32.partialorder %v1221, 0.0
  %v1306 = vsub.f32 0.0, %v1298
  %v1307 = vsub.f32 0.0, %v1299
  %v1308 = vsub.f32 0.0, %v1300
  %v1309 = vsub.f32 0.0, %v1301
  %v1310 = vsel %vm1302, %v1306, %v1298
  %v1311 = vsel %vm1303, %v1307, %v1299
  %v1312 = vsel %vm1304, %v1308, %v1300
  %v1313 = vsel %vm1305, %v1309, %v1301
  %v1314 = vadd.f32 %v1310, 1.0
  %v1315 = vadd.f32 %v1311, 1.0
  %v1316 = vadd.f32 %v1312, 1.0
  %v1317 = vadd.f32 %v1313, 1.0
  %v1318 = vmul.f32 %v1214, %v1314
  %v1319 = vmul.f32 %v1215, %v1315
  %v1320 = vmul.f32 %v1216, %v1316
  %v1321 = vmul.f32 %v1217, %v1317
  %v1322 = vld [vmem:[%s5] sm:$0x1]
  %v1323 = vld [vmem:[#allocation2] sm:$0x1]
  %1325 = vset.pattern.permute.xlu0 0
  %1326 = vperm.xlu0 %1325, %v1323
  %v1327 = vpop.permute.xlu0 %1326
  %v1329 = vlaneseq
  %v1330 = vshrl.u32 %v1329, 7
  %v1331 = vsub.s32 0, %v1330
  %v1332 = vrot.slane %v1327, %v1331
  %v1334 = vsel %vm286, %v1322, 0
  %1336 = vmatprep.subr.mxu0 0.0
  %1337 = vmatpush1.msra.mxu0 %v1318
  %1338 = vmatprep.subr.mxu0 0.0
  %1339 = vmatpush1.msra.mxu0 %v1319
  %1340 = vmatprep.subr.mxu0 0.0
  %1341 = vmatpush1.msra.mxu0 %v1320
  %1342 = vmatprep.subr.mxu0 0.0
  %1343 = vmatpush1.msra.mxu0 %v1321
  %1344 = vmatprep.subr.mxu0 0.0
  %1345 = vmatpush1.msra.mxu0 0.0
  %1346 = vmatprep.subr.mxu0 0.0
  %1347 = vmatpush1.msra.mxu0 0.0
  %1348 = vmatprep.subr.mxu0 0.0
  %1349 = vmatpush1.msra.mxu0 0.0
  %1350 = vmatprep.subr.mxu0 0.0
  %1351 = vmatpush1.msra.mxu0 0.0
  %1352 = vmatprep.subr.mxu0 0.0
  %1353 = vmatpush1.msra.mxu0 0.0
  %1354 = vmatprep.subr.mxu0 0.0
  %1355 = vmatpush1.msra.mxu0 0.0
  %1356 = vmatprep.subr.mxu0 0.0
  %1357 = vmatpush1.msra.mxu0 0.0
  %1358 = vmatprep.subr.mxu0 0.0
  %1359 = vmatpush1.msra.mxu0 0.0
  %1360 = vmatprep.subr.mxu0 0.0
  %1361 = vmatpush1.msra.mxu0 0.0
  %1362 = vmatprep.subr.mxu0 0.0
  %1363 = vmatpush1.msra.mxu0 0.0
  %1364 = vmatprep.subr.mxu0 0.0
  %1365 = vmatpush1.msra.mxu0 0.0
  %1366 = vmatprep.subr.mxu0 0.0
  %1367 = vmatpush1.msra.mxu0 0.0
  %1368 = vmatprep.subr.mxu0 0.0
  %1369 = vmatpush1.msra.mxu0 0.0
  %1370 = vmatprep.subr.mxu0 0.0
  %1371 = vmatpush1.msra.mxu0 0.0
  %1372 = vmatprep.subr.mxu0 0.0
  %1373 = vmatpush1.msra.mxu0 0.0
  %1374 = vmatprep.subr.mxu0 0.0
  %1375 = vmatpush1.msra.mxu0 0.0
  %1376 = vmatprep.subr.mxu0 0.0
  %1377 = vmatpush1.msra.mxu0 0.0
  %1378 = vmatprep.subr.mxu0 0.0
  %1379 = vmatpush1.msra.mxu0 0.0
  %1380 = vmatprep.subr.mxu0 0.0
  %1381 = vmatpush1.msra.mxu0 0.0
  %1382 = vmatprep.subr.mxu0 0.0
  %1383 = vmatpush1.msra.mxu0 0.0
  %1384 = vmatprep.subr.mxu0 0.0
  %1385 = vmatpush1.msra.mxu0 0.0
  %1386 = vmatprep.subr.mxu0 0.0
  %1387 = vmatpush1.msra.mxu0 0.0
  %1388 = vmatprep.subr.mxu0 0.0
  %1389 = vmatpush1.msra.mxu0 0.0
  %1390 = vmatprep.subr.mxu0 0.0
  %1391 = vmatpush1.msra.mxu0 0.0
  %1392 = vmatprep.subr.mxu0 0.0
  %1393 = vmatpush1.msra.mxu0 0.0
  %1394 = vmatprep.subr.mxu0 0.0
  %1395 = vmatpush1.msra.mxu0 0.0
  %1396 = vmatprep.subr.mxu0 0.0
  %1397 = vmatpush1.msra.mxu0 0.0
  %1398 = vmatprep.subr.mxu0 0.0
  %1399 = vmatpush1.msra.mxu0 0.0
  %1400 = vmatprep.mubr.f32.mxu0 0.0
  %1401 = vmatmul.mubr.f32.gmra.mrb[0].mxu0 %v1334
  %v1402 = vpop.f32.mrb[0].mxu0
  %v1403 = vadd.f32 %v1332, %v1402
  %v1404 = vpop.f32.mrb[0].mxu0
  %1405 = vdwg.mxu0
  %1406 = vst [vmem:[%s7] sm:$0x1] %v1403
  // Predicated region
  $region30: #{network_model_forward.1} parent=0 // pred_check
    _
  $region31: #{network_model_forward.1} parent=0 // pred_check_branch
    %1408 = sbr.rel (0) target = $region33
  $region32: #{network_model_forward.1} parent=0 // pred_region
    _
  $region33: #{network_model_forward.1} parent=0 // pred_fallthru
    _
  // Predicated region
  $region34: #{network_model_forward.1} parent=0 // pred_check
    _
  $region35: #{network_model_forward.1} parent=0 // pred_check_branch
    %1410 = sbr.rel (0) target = $region37
  $region36: #{network_model_forward.1} parent=0 // pred_region
    _
  $region37: #{network_model_forward.1} parent=0 // pred_fallthru
    _

</llo_original>
